<compile_context>
chip_gen: v5e
topology: v5e:2x2
jax: 0.10.0
libtpu: 0.0.40
codegen_flags: <defaults>
</compile_context>

<pallas_src>
import functools
import math

import jax
import jax.numpy as jnp
from jax import lax
from jax.experimental import pallas as pl
from jax.experimental.pallas import tpu as pltpu


def _flash_mha_outproj_kernel(q_ref, k_ref, v_ref, wo_ref, bo_ref, o_ref,
                              m_s, l_s, ctx_s, *,
                              num_heads, block_k, kv_len, kv_len_padded):
    kv = pl.program_id(2)
    nkv = pl.num_programs(2)

    @pl.when(kv == 0)
    def _init():
        m_s[...] = jnp.full(m_s.shape, -jnp.inf, m_s.dtype)
        l_s[...] = jnp.zeros(l_s.shape, l_s.dtype)
        ctx_s[...] = jnp.zeros(ctx_s.shape, ctx_s.dtype)

    q = q_ref[...]                      # (H, tq, dk) -- pre-scaled by 1/sqrt(d)
    k = k_ref[...]                      # (H, tk, dk)
    v = v_ref[...]                      # (H, tk, dv)

    # Scores for all heads in one batched MXU matmul (f32 accumulation).
    s = jnp.einsum("hqd,hkd->hqk", q, k,
                   preferred_element_type=jnp.float32)        # (H, tq, tk)

    if kv_len_padded != kv_len:         # static: mask padded key columns
        col = kv * block_k + lax.broadcasted_iota(jnp.int32, (1, 1, block_k), 2)
        s = jnp.where(col < kv_len, s, jnp.float32(-1e30))

    # Online softmax (unnormalised): defer the 1/l divide to the last kv step.
    m_prev = m_s[...]
    m_new = jnp.maximum(m_prev, s.max(axis=-1, keepdims=True))
    alpha = jnp.exp(m_prev - m_new)
    p = jnp.exp(s - m_new)
    l_s[...] = alpha * l_s[...] + p.sum(axis=-1, keepdims=True)
    ctx_s[...] = alpha * ctx_s[...] + jnp.einsum(
        "hqk,hkd->hqd", p.astype(v.dtype), v,
        preferred_element_type=jnp.float32)
    m_s[...] = m_new

    # TODO(synk): training-mode dropout on the attention weights is not
    # implemented; eval-mode (identity) semantics are reproduced exactly.

    @pl.when(kv == nkv - 1)
    def _finalize():
        out = jnp.zeros(o_ref.shape, jnp.float32)
        for h in range(num_heads):                  # static unroll over heads
            inv_l = pl.reciprocal(l_s[h], approx=True)          # (tq, 1) EUP
            ctx_h = (ctx_s[h] * inv_l).astype(wo_ref.dtype)      # (tq, dv)
            out = out + jnp.dot(ctx_h, wo_ref[h],
                                preferred_element_type=jnp.float32)
        o_ref[...] = (out + bo_ref[...].astype(jnp.float32)).astype(o_ref.dtype)


def _round_up(x, m):
    return (x + m - 1) // m * m


@functools.partial(jax.jit, static_argnames=("num_heads", "block_q", "block_k"))
def cross_multi_headed_attention(query, key, value, params, *,
                                 num_heads, block_q=256, block_k=512):
    """query: [B, Lq, E]; key: [B, Lk, kdim]; value: [B, Lk, vdim]."""
    B, Lq, E = query.shape
    _, Lk, _ = key.shape
    Kdim = params["wq"].shape[1]
    Vdim = params["wv"].shape[1]
    H = num_heads
    assert E % H == 0 and Kdim % H == 0 and Vdim % H == 0
    assert Kdim == Vdim, "kdim must equal vdim (module constraint)"
    dk = Kdim // H
    dv = Vdim // H
    # Matches torch module: sqrt_dim = (embed_dim // num_heads) ** 0.5
    scale = 1.0 / math.sqrt(E // H)
    dtype = query.dtype

    # ---- Projections hoisted out of the attention kernel (done once by XLA
    # instead of once per query tile inside the kernel).  Scale folded into Wq.
    q_proj = (query @ (params["wq"] * scale) + params["bq"] * scale).astype(dtype)
    k_proj = (key @ params["wk"] + params["bk"]).astype(dtype)
    v_proj = (value @ params["wv"] + params["bv"]).astype(dtype)

    def to_heads(x, d):                  # (B, L, H*d) -> (B, H, L, d)
        b, l, _ = x.shape
        return x.reshape(b, l, H, d).transpose(0, 2, 1, 3)

    q_h = to_heads(q_proj, dk)
    k_h = to_heads(k_proj, dk)
    v_h = to_heads(v_proj, dv)
    wo_h = params["wo"].reshape(H, dv, E)
    bo = params["bo"].reshape(1, E)

    # Tile sizes (sublane-friendly), pad sequence lengths to tile multiples.
    tq = min(block_q, _round_up(Lq, 8))
    Lq_pad = _round_up(Lq, tq)
    tk = min(block_k, _round_up(Lk, 8))
    Lk_pad = _round_up(Lk, tk)

    if Lq_pad != Lq:
        q_h = jnp.pad(q_h, ((0, 0), (0, 0), (0, Lq_pad - Lq), (0, 0)))
    if Lk_pad != Lk:
        k_h = jnp.pad(k_h, ((0, 0), (0, 0), (0, Lk_pad - Lk), (0, 0)))
        v_h = jnp.pad(v_h, ((0, 0), (0, 0), (0, Lk_pad - Lk), (0, 0)))

    grid = (B, Lq_pad // tq, Lk_pad // tk)

    itemsize = query.dtype.itemsize
    n_q_tiles = Lq_pad // tq
    flops = (2 * B * H * Lq_pad * Lk_pad * (dk + dv)
             + 2 * B * Lq_pad * Vdim * E)
    bytes_accessed = itemsize * (
        B * Lq_pad * Kdim                              # q blocks
        + B * n_q_tiles * Lk_pad * (Kdim + Vdim)       # k/v re-streamed per q tile
        + H * dv * E + E                               # output weights (once)
        + B * Lq_pad * E)                              # output

    kernel = functools.partial(
        _flash_mha_outproj_kernel, num_heads=H, block_k=tk,
        kv_len=Lk, kv_len_padded=Lk_pad)

    out = pl.pallas_call(
        kernel,
        out_shape=jax.ShapeDtypeStruct((B, Lq_pad, E), dtype),
        grid_spec=pltpu.PrefetchScalarGridSpec(
            num_scalar_prefetch=0,
            grid=grid,
            in_specs=[
                pl.BlockSpec((None, H, tq, dk), lambda b, i, kv: (b, 0, i, 0)),
                pl.BlockSpec((None, H, tk, dk), lambda b, i, kv: (b, 0, kv, 0)),
                pl.BlockSpec((None, H, tk, dv), lambda b, i, kv: (b, 0, kv, 0)),
                pl.BlockSpec((H, dv, E), lambda b, i, kv: (0, 0, 0)),   # Wo (resident)
                pl.BlockSpec((1, E), lambda b, i, kv: (0, 0)),          # bo
            ],
            out_specs=pl.BlockSpec((None, tq, E), lambda b, i, kv: (b, i, 0)),
            scratch_shapes=[
                pltpu.VMEM((H, tq, 1), jnp.float32),    # running max
                pltpu.VMEM((H, tq, 1), jnp.float32),    # running denom
                pltpu.VMEM((H, tq, dv), jnp.float32),   # unnormalised context
            ],
        ),
        compiler_params=pltpu.CompilerParams(
            dimension_semantics=("parallel", "parallel", "arbitrary"),
            vmem_limit_bytes=32 * 1024 * 1024),
        cost_estimate=pl.CostEstimate(
            flops=flops,
            transcendentals=B * H * Lq_pad * Lk_pad,
            bytes_accessed=bytes_accessed),
    )(q_h, k_h, v_h, wo_h, bo)

    return out[:, :Lq, :]


def init_params(key, embed_dim, kdim, vdim, dtype=jnp.float32):
    """Deterministic synthetic parameters.

    torch Linear stores weight as (out, in); here weights are stored transposed
    (in, out) so the projections compute x @ W directly.
    """
    ks = jax.random.split(key, 8)
    s = 0.05
    return {
        "wq": jax.random.normal(ks[0], (embed_dim, kdim), dtype) * s,
        "bq": jax.random.normal(ks[1], (kdim,), dtype) * s,
        "wk": jax.random.normal(ks[2], (kdim, kdim), dtype) * s,
        "bk": jax.random.normal(ks[3], (kdim,), dtype) * s,
        "wv": jax.random.normal(ks[4], (vdim, vdim), dtype) * s,
        "bv": jax.random.normal(ks[5], (vdim,), dtype) * s,
        "wo": jax.random.normal(ks[6], (vdim, embed_dim), dtype) * s,
        "bo": jax.random.normal(ks[7], (embed_dim,), dtype) * s,
    }


def _reference(query, key, value, params, num_heads):
    """Pure-JAX reference matching the PyTorch forward (eval mode)."""
    E = query.shape[-1]
    scale = 1.0 / math.sqrt(E // num_heads)
    q = query @ params["wq"] + params["bq"]
    k = key @ params["wk"] + params["bk"]
    v = value @ params["wv"] + params["bv"]

    def split(x):
        b, l, hd = x.shape
        d = hd // num_heads
        return x.reshape(b, l, num_heads, d).transpose(0, 2, 1, 3)

    qh, kh, vh = split(q), split(k), split(v)
    scores = jnp.einsum("bhid,bhjd->bhij", qh, kh) * scale
    attn = jax.nn.softmax(scores, axis=-1)
    ctx = jnp.einsum("bhij,bhjd->bhid", attn, vh)
    Bq, H, Lq, dv = ctx.shape
    ctx = ctx.transpose(0, 2, 1, 3).reshape(Bq, Lq, H * dv)
    return ctx @ params["wo"] + params["bo"]


if __name__ == "__main__":
    B, Lq, Lk = 2, 10, 20                        # exercises q/kv padding + mask
    embed_dim, kdim, vdim, num_heads = 128, 128, 128, 4

    root = jax.random.PRNGKey(0)
    kq, kk, kv, kp = jax.random.split(root, 4)
    query = jax.random.normal(kq, (B, Lq, embed_dim), jnp.float32)
    key_in = jax.random.normal(kk, (B, Lk, kdim), jnp.float32)
    value_in = jax.random.normal(kv, (B, Lk, vdim), jnp.float32)
    params = init_params(kp, embed_dim, kdim, vdim)

    out = cross_multi_headed_attention(query, key_in, value_in, params,
                                       num_heads=num_heads)
    out = jax.block_until_ready(out)

    ref = _reference(query, key_in, value_in, params, num_heads)
    assert out.shape == (B, Lq, embed_dim)
    err = float(jnp.max(jnp.abs(out - ref)))
    assert jnp.allclose(out, ref, atol=2e-3, rtol=2e-3), err
    print("KERNEL_OK")
</pallas_src>

<mosaic_0001>
module attributes {stable_mosaic.version = 11 : i64} {
  func.func @_flash_mha_outproj_kernel(%arg0: i32, %arg1: i32, %arg2: i32, %arg3: memref<1x4x16x32xf32, #tpu.memory_space<vmem>>, %arg4: memref<1x4x24x32xf32, #tpu.memory_space<vmem>>, %arg5: memref<1x4x24x32xf32, #tpu.memory_space<vmem>>, %arg6: memref<4x32x128xf32, #tpu.memory_space<vmem>>, %arg7: memref<1x128xf32, #tpu.memory_space<vmem>>, %arg8: memref<1x16x128xf32, #tpu.memory_space<vmem>>, %arg9: memref<4x16x1xf32, #tpu.memory_space<vmem>>, %arg10: memref<4x16x1xf32, #tpu.memory_space<vmem>>, %arg11: memref<4x16x32xf32, #tpu.memory_space<vmem>>) attributes {dimension_semantics = [#tpu.dimension_semantics<parallel>, #tpu.dimension_semantics<parallel>, #tpu.dimension_semantics<arbitrary>], iteration_bounds = array<i64: 2, 1, 1>, scalar_prefetch = 0 : i64, scratch_operands = 3 : i64, tpu.core_type = #tpu.core_type<tc>, window_params = [{transform_indices = @transform_0, window_bounds = array<i64: 1, 4, 16, 32>}, {transform_indices = @transform_1, window_bounds = array<i64: 1, 4, 24, 32>}, {transform_indices = @transform_2, window_bounds = array<i64: 1, 4, 24, 32>}, {pipeline_mode = #tpu.pipeline_mode<synchronous>, transform_indices = @transform_3, window_bounds = array<i64: 4, 32, 128>}, {pipeline_mode = #tpu.pipeline_mode<synchronous>, transform_indices = @transform_4, window_bounds = array<i64: 1, 128>}, {transform_indices = @transform_5, window_bounds = array<i64: 1, 16, 128>}]} {
    %c0_i32 = arith.constant 0 : i32
    %0 = arith.cmpi eq, %arg2, %c0_i32 : i32
    %1 = arith.extui %0 : i1 to i32
    %c0_i32_0 = arith.constant 0 : i32
    %2 = arith.cmpi ne, %1, %c0_i32_0 : i32
    scf.if %2 {
      %cst_36 = arith.constant 0xFF800000 : f32
      %45 = vector.broadcast %cst_36 : f32 to vector<4x16x1xf32>
      %c0_37 = arith.constant 0 : index
      %c0_38 = arith.constant 0 : index
      %c0_39 = arith.constant 0 : index
      %46 = vector.load %arg9[%c0_37, %c0_38, %c0_39] : memref<4x16x1xf32, #tpu.memory_space<vmem>>, vector<4x16x1xf32>
      tpu.vector_store %arg9[%c0_37, %c0_38, %c0_39], %45 {strides = array<i32>} : memref<4x16x1xf32, #tpu.memory_space<vmem>>, vector<4x16x1xf32>,
      %cst_40 = arith.constant 0.000000e+00 : f32
      %47 = vector.broadcast %cst_40 : f32 to vector<4x16x1xf32>
      %c0_41 = arith.constant 0 : index
      %c0_42 = arith.constant 0 : index
      %c0_43 = arith.constant 0 : index
      %48 = vector.load %arg10[%c0_41, %c0_42, %c0_43] : memref<4x16x1xf32, #tpu.memory_space<vmem>>, vector<4x16x1xf32>
      tpu.vector_store %arg10[%c0_41, %c0_42, %c0_43], %47 {strides = array<i32>} : memref<4x16x1xf32, #tpu.memory_space<vmem>>, vector<4x16x1xf32>,
      %cst_44 = arith.constant 0.000000e+00 : f32
      %49 = vector.broadcast %cst_44 : f32 to vector<4x16x32xf32>
      %c0_45 = arith.constant 0 : index
      %c0_46 = arith.constant 0 : index
      %c0_47 = arith.constant 0 : index
      %50 = vector.load %arg11[%c0_45, %c0_46, %c0_47] : memref<4x16x32xf32, #tpu.memory_space<vmem>>, vector<4x16x32xf32>
      tpu.vector_store %arg11[%c0_45, %c0_46, %c0_47], %49 {strides = array<i32>} : memref<4x16x32xf32, #tpu.memory_space<vmem>>, vector<4x16x32xf32>,
    } else {
    }
    %c0 = arith.constant 0 : index
    %c0_1 = arith.constant 0 : index
    %c0_2 = arith.constant 0 : index
    %c0_3 = arith.constant 0 : index
    %3 = vector.load %arg3[%c0, %c0_1, %c0_2, %c0_3] : memref<1x4x16x32xf32, #tpu.memory_space<vmem>>, vector<1x4x16x32xf32>
    %4 = vector.shape_cast %3 : vector<1x4x16x32xf32> to vector<4x16x32xf32>
    %c0_4 = arith.constant 0 : index
    %c0_5 = arith.constant 0 : index
    %c0_6 = arith.constant 0 : index
    %c0_7 = arith.constant 0 : index
    %5 = vector.load %arg4[%c0_4, %c0_5, %c0_6, %c0_7] : memref<1x4x24x32xf32, #tpu.memory_space<vmem>>, vector<1x4x24x32xf32>
    %6 = vector.shape_cast %5 : vector<1x4x24x32xf32> to vector<4x24x32xf32>
    %c0_8 = arith.constant 0 : index
    %c0_9 = arith.constant 0 : index
    %c0_10 = arith.constant 0 : index
    %c0_11 = arith.constant 0 : index
    %7 = vector.load %arg5[%c0_8, %c0_9, %c0_10, %c0_11] : memref<1x4x24x32xf32, #tpu.memory_space<vmem>>, vector<1x4x24x32xf32>
    %8 = vector.shape_cast %7 : vector<1x4x24x32xf32> to vector<4x24x32xf32>
    "tpu.trace_start"() <{level = 10 : i32, message = "hqd,hkd->hqk"}> : () -> ()
    %cst = arith.constant dense<0.000000e+00> : vector<4x16x24xf32>
    %9 = tpu.matmul %4, %6, %cst {dimension_numbers = #tpu.dot_dimension_numbers<[2], [2], [1], [1], [0, 0, 0, 1, 1, 1], [0], [0]>} : vector<4x16x32xf32>, vector<4x24x32xf32>, vector<4x16x24xf32> -> vector<4x16x24xf32>
    "tpu.trace_stop"() : () -> ()
    %c24_i32 = arith.constant 24 : i32
    %10 = arith.muli %arg2, %c24_i32 : i32
    %11 = tpu.iota {dimensions = array<i32: 2>} : vector<1x1x24xi32>
    %12 = vector.broadcast %10 : i32 to vector<1x1x24xi32>
    %13 = arith.addi %12, %11 : vector<1x1x24xi32>
    %c20_i32 = arith.constant 20 : i32
    %14 = vector.broadcast %c20_i32 : i32 to vector<1x1x24xi32>
    %15 = arith.cmpi slt, %13, %14 : vector<1x1x24xi32>
    %cst_12 = arith.constant -1.000000e+30 : f32
    %16 = vector.shape_cast %15 : vector<1x1x24xi1> to vector<1x1x24xi1>
    %17 = vector.broadcast %16 : vector<1x1x24xi1> to vector<4x16x24xi1>
    %18 = vector.broadcast %cst_12 : f32 to vector<4x16x24xf32>
    %19 = arith.select %17, %9, %18 : vector<4x16x24xi1>, vector<4x16x24xf32>
    %c0_13 = arith.constant 0 : index
    %c0_14 = arith.constant 0 : index
    %c0_15 = arith.constant 0 : index
    %20 = vector.load %arg9[%c0_13, %c0_14, %c0_15] : memref<4x16x1xf32, #tpu.memory_space<vmem>>, vector<4x16x1xf32>
    %cst_16 = arith.constant dense<0xFF800000> : vector<4x16xf32>
    %21 = vector.multi_reduction <maximumf>, %19, %cst_16 [2] : vector<4x16x24xf32> to vector<4x16xf32>
    %22 = vector.shape_cast %21 : vector<4x16xf32> to vector<4x16x1xf32>
    %23 = arith.maximumf %20, %22 : vector<4x16x1xf32>
    %24 = arith.subf %20, %23 : vector<4x16x1xf32>
    %25 = math.exp %24 : vector<4x16x1xf32>
    %26 = vector.broadcast %23 : vector<4x16x1xf32> to vector<4x16x24xf32>
    %27 = arith.subf %19, %26 : vector<4x16x24xf32>
    %28 = math.exp %27 : vector<4x16x24xf32>
    %c0_17 = arith.constant 0 : index
    %c0_18 = arith.constant 0 : index
    %c0_19 = arith.constant 0 : index
    %29 = vector.load %arg10[%c0_17, %c0_18, %c0_19] : memref<4x16x1xf32, #tpu.memory_space<vmem>>, vector<4x16x1xf32>
    %30 = arith.mulf %25, %29 : vector<4x16x1xf32>
    %cst_20 = arith.constant dense<0.000000e+00> : vector<4x16xf32>
    %31 = vector.multi_reduction <add>, %28, %cst_20 [2] : vector<4x16x24xf32> to vector<4x16xf32>
    %32 = vector.shape_cast %31 : vector<4x16xf32> to vector<4x16x1xf32>
    %33 = arith.addf %30, %32 : vector<4x16x1xf32>
    %c0_21 = arith.constant 0 : index
    %c0_22 = arith.constant 0 : index
    %c0_23 = arith.constant 0 : index
    %34 = vector.load %arg10[%c0_21, %c0_22, %c0_23] : memref<4x16x1xf32, #tpu.memory_space<vmem>>, vector<4x16x1xf32>
    tpu.vector_store %arg10[%c0_21, %c0_22, %c0_23], %33 {strides = array<i32>} : memref<4x16x1xf32, #tpu.memory_space<vmem>>, vector<4x16x1xf32>,
    %c0_24 = arith.constant 0 : index
    %c0_25 = arith.constant 0 : index
    %c0_26 = arith.constant 0 : index
    %35 = vector.load %arg11[%c0_24, %c0_25, %c0_26] : memref<4x16x32xf32, #tpu.memory_space<vmem>>, vector<4x16x32xf32>
    %36 = vector.broadcast %25 : vector<4x16x1xf32> to vector<4x16x32xf32>
    %37 = arith.mulf %36, %35 : vector<4x16x32xf32>
    "tpu.trace_start"() <{level = 10 : i32, message = "hqk,hkd->hqd"}> : () -> ()
    %cst_27 = arith.constant dense<0.000000e+00> : vector<4x16x32xf32>
    %38 = tpu.matmul %28, %8, %cst_27 {dimension_numbers = #tpu.dot_dimension_numbers<[2], [1], [1], [2], [0, 0, 0, 1, 1, 2], [0], [0]>} : vector<4x16x24xf32>, vector<4x24x32xf32>, vector<4x16x32xf32> -> vector<4x16x32xf32>
    "tpu.trace_stop"() : () -> ()
    %39 = arith.addf %37, %38 : vector<4x16x32xf32>
    %c0_28 = arith.constant 0 : index
    %c0_29 = arith.constant 0 : index
    %c0_30 = arith.constant 0 : index
    %40 = vector.load %arg11[%c0_28, %c0_29, %c0_30] : memref<4x16x32xf32, #tpu.memory_space<vmem>>, vector<4x16x32xf32>
    tpu.vector_store %arg11[%c0_28, %c0_29, %c0_30], %39 {strides = array<i32>} : memref<4x16x32xf32, #tpu.memory_space<vmem>>, vector<4x16x32xf32>,
    %c0_31 = arith.constant 0 : index
    %c0_32 = arith.constant 0 : index
    %c0_33 = arith.constant 0 : index
    %41 = vector.load %arg9[%c0_31, %c0_32, %c0_33] : memref<4x16x1xf32, #tpu.memory_space<vmem>>, vector<4x16x1xf32>
    tpu.vector_store %arg9[%c0_31, %c0_32, %c0_33], %23 {strides = array<i32>} : memref<4x16x1xf32, #tpu.memory_space<vmem>>, vector<4x16x1xf32>,
    %c0_i32_34 = arith.constant 0 : i32
    %42 = arith.cmpi eq, %arg2, %c0_i32_34 : i32
    %43 = arith.extui %42 : i1 to i32
    %c0_i32_35 = arith.constant 0 : i32
    %44 = arith.cmpi ne, %43, %c0_i32_35 : i32
    scf.if %44 {
      %cst_36 = arith.constant 0.000000e+00 : f32
      %45 = vector.broadcast %cst_36 : f32 to vector<16x128xf32>
      %c0_37 = arith.constant 0 : index
      %c0_38 = arith.constant 0 : index
      %c0_39 = arith.constant 0 : index
      %46 = vector.load %arg10[%c0_37, %c0_38, %c0_39] : memref<4x16x1xf32, #tpu.memory_space<vmem>>, vector<1x16x1xf32>
      %47 = vector.shape_cast %46 : vector<1x16x1xf32> to vector<16x1xf32>
      %48 = tpu.reciprocal %47 {approx = true} : vector<16x1xf32> -> vector<16x1xf32>
      %c0_40 = arith.constant 0 : index
      %c0_41 = arith.constant 0 : index
      %c0_42 = arith.constant 0 : index
      %49 = vector.load %arg11[%c0_40, %c0_41, %c0_42] : memref<4x16x32xf32, #tpu.memory_space<vmem>>, vector<1x16x32xf32>
      %50 = vector.shape_cast %49 : vector<1x16x32xf32> to vector<16x32xf32>
      %51 = vector.broadcast %48 : vector<16x1xf32> to vector<16x32xf32>
      %52 = arith.mulf %50, %51 : vector<16x32xf32>
      %c0_43 = arith.constant 0 : index
      %c0_44 = arith.constant 0 : index
      %c0_45 = arith.constant 0 : index
      %53 = vector.load %arg6[%c0_43, %c0_44, %c0_45] : memref<4x32x128xf32, #tpu.memory_space<vmem>>, vector<1x32x128xf32>
      %54 = vector.shape_cast %53 : vector<1x32x128xf32> to vector<32x128xf32>
      %cst_46 = arith.constant dense<0.000000e+00> : vector<16x128xf32>
      %55 = tpu.matmul %52, %54, %cst_46 {dimension_numbers = #tpu.dot_dimension_numbers<[1], [0], [0], [1], [0, 0, 1, 1], [], []>} : vector<16x32xf32>, vector<32x128xf32>, vector<16x128xf32> -> vector<16x128xf32>
      %56 = arith.addf %45, %55 : vector<16x128xf32>
      %c1 = arith.constant 1 : index
      %c0_47 = arith.constant 0 : index
      %c0_48 = arith.constant 0 : index
      %57 = vector.load %arg10[%c1, %c0_47, %c0_48] : memref<4x16x1xf32, #tpu.memory_space<vmem>>, vector<1x16x1xf32>
      %58 = vector.shape_cast %57 : vector<1x16x1xf32> to vector<16x1xf32>
      %59 = tpu.reciprocal %58 {approx = true} : vector<16x1xf32> -> vector<16x1xf32>
      %c1_49 = arith.constant 1 : index
      %c0_50 = arith.constant 0 : index
      %c0_51 = arith.constant 0 : index
      %60 = vector.load %arg11[%c1_49, %c0_50, %c0_51] : memref<4x16x32xf32, #tpu.memory_space<vmem>>, vector<1x16x32xf32>
      %61 = vector.shape_cast %60 : vector<1x16x32xf32> to vector<16x32xf32>
      %62 = vector.broadcast %59 : vector<16x1xf32> to vector<16x32xf32>
      %63 = arith.mulf %61, %62 : vector<16x32xf32>
      %c1_52 = arith.constant 1 : index
      %c0_53 = arith.constant 0 : index
      %c0_54 = arith.constant 0 : index
      %64 = vector.load %arg6[%c1_52, %c0_53, %c0_54] : memref<4x32x128xf32, #tpu.memory_space<vmem>>, vector<1x32x128xf32>
      %65 = vector.shape_cast %64 : vector<1x32x128xf32> to vector<32x128xf32>
      %cst_55 = arith.constant dense<0.000000e+00> : vector<16x128xf32>
      %66 = tpu.matmul %63, %65, %cst_55 {dimension_numbers = #tpu.dot_dimension_numbers<[1], [0], [0], [1], [0, 0, 1, 1], [], []>} : vector<16x32xf32>, vector<32x128xf32>, vector<16x128xf32> -> vector<16x128xf32>
      %67 = arith.addf %56, %66 : vector<16x128xf32>
      %c2 = arith.constant 2 : index
      %c0_56 = arith.constant 0 : index
      %c0_57 = arith.constant 0 : index
      %68 = vector.load %arg10[%c2, %c0_56, %c0_57] : memref<4x16x1xf32, #tpu.memory_space<vmem>>, vector<1x16x1xf32>
      %69 = vector.shape_cast %68 : vector<1x16x1xf32> to vector<16x1xf32>
      %70 = tpu.reciprocal %69 {approx = true} : vector<16x1xf32> -> vector<16x1xf32>
      %c2_58 = arith.constant 2 : index
      %c0_59 = arith.constant 0 : index
      %c0_60 = arith.constant 0 : index
      %71 = vector.load %arg11[%c2_58, %c0_59, %c0_60] : memref<4x16x32xf32, #tpu.memory_space<vmem>>, vector<1x16x32xf32>
      %72 = vector.shape_cast %71 : vector<1x16x32xf32> to vector<16x32xf32>
      %73 = vector.broadcast %70 : vector<16x1xf32> to vector<16x32xf32>
      %74 = arith.mulf %72, %73 : vector<16x32xf32>
      %c2_61 = arith.constant 2 : index
      %c0_62 = arith.constant 0 : index
      %c0_63 = arith.constant 0 : index
      %75 = vector.load %arg6[%c2_61, %c0_62, %c0_63] : memref<4x32x128xf32, #tpu.memory_space<vmem>>, vector<1x32x128xf32>
      %76 = vector.shape_cast %75 : vector<1x32x128xf32> to vector<32x128xf32>
      %cst_64 = arith.constant dense<0.000000e+00> : vector<16x128xf32>
      %77 = tpu.matmul %74, %76, %cst_64 {dimension_numbers = #tpu.dot_dimension_numbers<[1], [0], [0], [1], [0, 0, 1, 1], [], []>} : vector<16x32xf32>, vector<32x128xf32>, vector<16x128xf32> -> vector<16x128xf32>
      %78 = arith.addf %67, %77 : vector<16x128xf32>
      %c3 = arith.constant 3 : index
      %c0_65 = arith.constant 0 : index
      %c0_66 = arith.constant 0 : index
      %79 = vector.load %arg10[%c3, %c0_65, %c0_66] : memref<4x16x1xf32, #tpu.memory_space<vmem>>, vector<1x16x1xf32>
      %80 = vector.shape_cast %79 : vector<1x16x1xf32> to vector<16x1xf32>
      %81 = tpu.reciprocal %80 {approx = true} : vector<16x1xf32> -> vector<16x1xf32>
      %c3_67 = arith.constant 3 : index
      %c0_68 = arith.constant 0 : index
      %c0_69 = arith.constant 0 : index
      %82 = vector.load %arg11[%c3_67, %c0_68, %c0_69] : memref<4x16x32xf32, #tpu.memory_space<vmem>>, vector<1x16x32xf32>
      %83 = vector.shape_cast %82 : vector<1x16x32xf32> to vector<16x32xf32>
      %84 = vector.broadcast %81 : vector<16x1xf32> to vector<16x32xf32>
      %85 = arith.mulf %83, %84 : vector<16x32xf32>
      %c3_70 = arith.constant 3 : index
      %c0_71 = arith.constant 0 : index
      %c0_72 = arith.constant 0 : index
      %86 = vector.load %arg6[%c3_70, %c0_71, %c0_72] : memref<4x32x128xf32, #tpu.memory_space<vmem>>, vector<1x32x128xf32>
      %87 = vector.shape_cast %86 : vector<1x32x128xf32> to vector<32x128xf32>
      %cst_73 = arith.constant dense<0.000000e+00> : vector<16x128xf32>
      %88 = tpu.matmul %85, %87, %cst_73 {dimension_numbers = #tpu.dot_dimension_numbers<[1], [0], [0], [1], [0, 0, 1, 1], [], []>} : vector<16x32xf32>, vector<32x128xf32>, vector<16x128xf32> -> vector<16x128xf32>
      %89 = arith.addf %78, %88 : vector<16x128xf32>
      %c0_74 = arith.constant 0 : index
      %c0_75 = arith.constant 0 : index
      %90 = vector.load %arg7[%c0_74, %c0_75] : memref<1x128xf32, #tpu.memory_space<vmem>>, vector<1x128xf32>
      %91 = vector.broadcast %90 : vector<1x128xf32> to vector<16x128xf32>
      %92 = arith.addf %89, %91 : vector<16x128xf32>
      %c0_76 = arith.constant 0 : index
      %c0_77 = arith.constant 0 : index
      %c0_78 = arith.constant 0 : index
      %93 = vector.load %arg8[%c0_76, %c0_77, %c0_78] : memref<1x16x128xf32, #tpu.memory_space<vmem>>, vector<1x16x128xf32>
      %94 = vector.shape_cast %93 : vector<1x16x128xf32> to vector<16x128xf32>
      %95 = vector.shape_cast %92 : vector<16x128xf32> to vector<1x16x128xf32>
      tpu.vector_store %arg8[%c0_76, %c0_77, %c0_78], %95 {strides = array<i32>} : memref<1x16x128xf32, #tpu.memory_space<vmem>>, vector<1x16x128xf32>,
    } else {
    }
    return
  }
  func.func @transform_0(%arg0: i32, %arg1: i32, %arg2: i32) -> (i32, i32, i32, i32) {
    %c0_i32 = arith.constant 0 : i32
    %c0_i32_0 = arith.constant 0 : i32
    %c0_i32_1 = arith.constant 0 : i32
    return %arg0, %c0_i32, %arg1, %c0_i32_0 : i32, i32, i32, i32
  }
  func.func @transform_1(%arg0: i32, %arg1: i32, %arg2: i32) -> (i32, i32, i32, i32) {
    %c0_i32 = arith.constant 0 : i32
    %c0_i32_0 = arith.constant 0 : i32
    %c0_i32_1 = arith.constant 0 : i32
    return %arg0, %c0_i32, %arg2, %c0_i32_0 : i32, i32, i32, i32
  }
  func.func @transform_2(%arg0: i32, %arg1: i32, %arg2: i32) -> (i32, i32, i32, i32) {
    %c0_i32 = arith.constant 0 : i32
    %c0_i32_0 = arith.constant 0 : i32
    %c0_i32_1 = arith.constant 0 : i32
    return %arg0, %c0_i32, %arg2, %c0_i32_0 : i32, i32, i32, i32
  }
  func.func @transform_3(%arg0: i32, %arg1: i32, %arg2: i32) -> (i32, i32, i32) {
    %c0_i32 = arith.constant 0 : i32
    %c0_i32_0 = arith.constant 0 : i32
    %c0_i32_1 = arith.constant 0 : i32
    %c0_i32_2 = arith.constant 0 : i32
    return %c0_i32, %c0_i32_0, %c0_i32_1 : i32, i32, i32
  }
  func.func @transform_4(%arg0: i32, %arg1: i32, %arg2: i32) -> (i32, i32) {
    %c0_i32 = arith.constant 0 : i32
    %c0_i32_0 = arith.constant 0 : i32
    %c0_i32_1 = arith.constant 0 : i32
    return %c0_i32, %c0_i32_0 : i32, i32
  }
  func.func @transform_5(%arg0: i32, %arg1: i32, %arg2: i32) -> (i32, i32, i32) {
    %c0_i32 = arith.constant 0 : i32
    %c0_i32_0 = arith.constant 0 : i32
    return %arg0, %arg1, %c0_i32 : i32, i32, i32
  }
}

</mosaic_0001>

<llo_original>
// kernel: cross_multi_headed_attention.1
$region0: #{cross_multi_headed_attention.1}
  #allocation0 [shape = 'u32[]', space=smem, size = 0x4, offset = 0x4, fixed_abs, tag = 'smem constant byte address 0x4 - core index']
  #allocation1 [shape = 'u32[72,128]{1,0:T(1,128)}', space=vmem, size = 0x9000, scoped, tag = 'internal scratch']
  #allocation2 [shape = 'f32[4,16,1]{2,1,0:T(8,128)}', space=vmem, size = 0x8000, scoped, tag = 'scratch operand']
  #allocation3 [shape = 'f32[4,16,1]{2,1,0:T(8,128)}', space=vmem, size = 0x8000, scoped, tag = 'scratch operand']
  #allocation4 [shape = 'f32[4,16,32]{2,1,0:T(8,128)}', space=vmem, size = 0x8000, scoped, tag = 'scratch operand']
  %s0 = inlined_call_operand.vmem [shape: f32[2,4,16,32], index: 0, kind: input, shape index: {}]
  %s1 = inlined_call_operand.vmem [shape: f32[2,4,24,32], index: 1, kind: input, shape index: {}]
  %s2 = inlined_call_operand.vmem [shape: f32[2,4,24,32], index: 2, kind: input, shape index: {}]
  %s3 = inlined_call_operand.vmem [shape: f32[4,32,128], index: 3, kind: input, shape index: {}]
  %s4 = inlined_call_operand.vmem [shape: f32[1,128], index: 4, kind: input, shape index: {}]
  %s5 = inlined_call_operand.vmem [shape: f32[2,16,128], index: 5, kind: output, shape index: {}]
  %s6 = sld [smem:[#allocation0]]
  $region61: #{cross_multi_headed_attention.1} parent=0
    _
  %s8 = ssub.s32 1, %s6
  %s9 = scalar_select 0, %s8, %s6
  loop: start=0, step=1, limit=4
  $region2: #{cross_multi_headed_attention.1} parent=0 // loop_pre_header
    _
  $region3: #{cross_multi_headed_attention.1} parent=0 // loop_header
    %s11 = sphi 0, %s15
    %p12 = scmp.ge.s32.totalorder %s11, 4
    %s18 = sphi 0, %s37
    %s19 = sphi 0, %s33
    %s20 = sphi 0, %s29
    %s21 = sphi 0, %s18
    %s22 = sphi 0, %s19
    %s23 = sphi 0, %s20
    %s24 = sphi 0, %s21
    %s25 = sphi 0, %s22
    %s26 = sphi 0, %s23
    %s42 = sphi 0, %s44
    %s45 = sphi 0, %s42
    %s46 = sphi 0, %s45
    %s62 = sphi 0, %s46
    %s70 = sphi 0, %s72
    %s73 = sphi 0, %s70
    %s74 = sphi 0, %s73
    %s90 = sphi 0, %s74
    %s98 = sphi 0, %s100
    %s101 = sphi 0, %s98
    %s102 = sphi 0, %s101
    %s118 = sphi 0, %s102
    %s122 = sphi 0, %s122
    %s124 = sphi 0, %s122
    %s125 = sphi 0, %s124
    %s139 = sphi 0, %s125
    %s143 = sphi 0, %s143
    %s145 = sphi 0, %s143
    %s146 = sphi 0, %s145
    %s160 = sphi 0, %s146
    %s168 = sphi 0, %s170
    %s171 = sphi 0, %s168
    %s172 = sphi 0, %s171
    %s188 = sphi 0, %s172
  $region4: #{cross_multi_headed_attention.1} parent=0 // loop_header_branch
    %14 = sbr.rel (%p12) target = $region8
  $region5: #{cross_multi_headed_attention.1} parent=0 // loop_body
    %s16 = ssub.s32 %s11, 1
    %s17 = ssub.s32 %s11, 2
    %s27 = sadd.s32 1, %s20
    %p28 = scmp.ge.s32.totalorder %s27, 1
    %s29 = scalar_select %p28, 0, %s27
    %s30 = sadd.s32 1, %s19
    %s31 = scalar_select %p28, %s30, %s19
    %p32 = scmp.ge.s32.totalorder %s31, 1
    %s33 = scalar_select %p32, 0, %s31
    %s34 = sadd.s32 1, %s18
    %s35 = scalar_select %p32, %s34, %s18
    %p36 = scmp.ge.s32.totalorder %s35, 2
    %s37 = scalar_select %p36, 0, %s35
    %s38 = ssub.s32 %s18, %s37
    %s39 = ssub.s32 %s19, %s33
    %s40 = sor.u32 %s38, %s39
    %p41 = scmp.eq.s32.totalorder %s40, 0
    %s43 = sadd.s32 %s42, 1
    %s44 = scalar_select %p41, %s42, %s43
    %p47 = pneg %p41
    %p48 = scmp.eq.s32.totalorder %s11, 1
    %p49 = por %p47, %p48
    %p50 = scmp.ne.s32.totalorder %s42, %s45
    %p51 = scmp.eq.s32.totalorder %s11, 0
    %p52 = por %p50, %p51
    %p53 = scmp.ne.s32.totalorder %s42, %s45
    %p54 = scmp.eq.s32.totalorder %s16, 1
    %p55 = por %p53, %p54
    %p56 = scmp.ne.s32.totalorder %s45, %s46
    %p57 = scmp.eq.s32.totalorder %s16, 0
    %p58 = por %p56, %p57
    %p59 = scmp.ne.s32.totalorder %s45, %s46
    %p60 = scmp.eq.s32.totalorder %s17, 1
    %p61 = por %p59, %p60
    %p63 = scmp.ne.s32.totalorder %s46, %s62
    %p64 = scmp.eq.s32.totalorder %s17, 0
    %p65 = por %p63, %p64
    %s66 = ssub.s32 %s18, %s37
    %s67 = ssub.s32 %s20, %s29
    %s68 = sor.u32 %s66, %s67
    %p69 = scmp.eq.s32.totalorder %s68, 0
    %s71 = sadd.s32 %s70, 1
    %s72 = scalar_select %p69, %s70, %s71
    %p75 = pneg %p69
    %p76 = scmp.eq.s32.totalorder %s11, 1
    %p77 = por %p75, %p76
    %p78 = scmp.ne.s32.totalorder %s70, %s73
    %p79 = scmp.eq.s32.totalorder %s11, 0
    %p80 = por %p78, %p79
    %p81 = scmp.ne.s32.totalorder %s70, %s73
    %p82 = scmp.eq.s32.totalorder %s16, 1
    %p83 = por %p81, %p82
    %p84 = scmp.ne.s32.totalorder %s73, %s74
    %p85 = scmp.eq.s32.totalorder %s16, 0
    %p86 = por %p84, %p85
    %p87 = scmp.ne.s32.totalorder %s73, %s74
    %p88 = scmp.eq.s32.totalorder %s17, 1
    %p89 = por %p87, %p88
    %p91 = scmp.ne.s32.totalorder %s74, %s90
    %p92 = scmp.eq.s32.totalorder %s17, 0
    %p93 = por %p91, %p92
    %s94 = ssub.s32 %s18, %s37
    %s95 = ssub.s32 %s20, %s29
    %s96 = sor.u32 %s94, %s95
    %p97 = scmp.eq.s32.totalorder %s96, 0
    %s99 = sadd.s32 %s98, 1
    %s100 = scalar_select %p97, %s98, %s99
    %p103 = pneg %p97
    %p104 = scmp.eq.s32.totalorder %s11, 1
    %p105 = por %p103, %p104
    %p106 = scmp.ne.s32.totalorder %s98, %s101
    %p107 = scmp.eq.s32.totalorder %s11, 0
    %p108 = por %p106, %p107
    %p109 = scmp.ne.s32.totalorder %s98, %s101
    %p110 = scmp.eq.s32.totalorder %s16, 1
    %p111 = por %p109, %p110
    %p112 = scmp.ne.s32.totalorder %s101, %s102
    %p113 = scmp.eq.s32.totalorder %s16, 0
    %p114 = por %p112, %p113
    %p115 = scmp.ne.s32.totalorder %s101, %s102
    %p116 = scmp.eq.s32.totalorder %s17, 1
    %p117 = por %p115, %p116
    %p119 = scmp.ne.s32.totalorder %s102, %s118
    %p120 = scmp.eq.s32.totalorder %s17, 0
    %p121 = por %p119, %p120
    %s123 = sadd.s32 %s122, 1
    %p126 = scmp.eq.s32.totalorder %s11, 1
    %p127 = scmp.ne.s32.totalorder %s122, %s124
    %p128 = scmp.eq.s32.totalorder %s11, 0
    %p129 = por %p127, %p128
    %p130 = scmp.ne.s32.totalorder %s122, %s124
    %p131 = scmp.eq.s32.totalorder %s16, 1
    %p132 = por %p130, %p131
    %p133 = scmp.ne.s32.totalorder %s124, %s125
    %p134 = scmp.eq.s32.totalorder %s16, 0
    %p135 = por %p133, %p134
    %p136 = scmp.ne.s32.totalorder %s124, %s125
    %p137 = scmp.eq.s32.totalorder %s17, 1
    %p138 = por %p136, %p137
    %p140 = scmp.ne.s32.totalorder %s125, %s139
    %p141 = scmp.eq.s32.totalorder %s17, 0
    %p142 = por %p140, %p141
    %s144 = sadd.s32 %s143, 1
    %p147 = scmp.eq.s32.totalorder %s11, 1
    %p148 = scmp.ne.s32.totalorder %s143, %s145
    %p149 = scmp.eq.s32.totalorder %s11, 0
    %p150 = por %p148, %p149
    %p151 = scmp.ne.s32.totalorder %s143, %s145
    %p152 = scmp.eq.s32.totalorder %s16, 1
    %p153 = por %p151, %p152
    %p154 = scmp.ne.s32.totalorder %s145, %s146
    %p155 = scmp.eq.s32.totalorder %s16, 0
    %p156 = por %p154, %p155
    %p157 = scmp.ne.s32.totalorder %s145, %s146
    %p158 = scmp.eq.s32.totalorder %s17, 1
    %p159 = por %p157, %p158
    %p161 = scmp.ne.s32.totalorder %s146, %s160
    %p162 = scmp.eq.s32.totalorder %s17, 0
    %p163 = por %p161, %p162
    %s164 = ssub.s32 %s18, %s37
    %s165 = ssub.s32 %s19, %s33
    %s166 = sor.u32 %s164, %s165
    %p167 = scmp.eq.s32.totalorder %s166, 0
    %s169 = sadd.s32 %s168, 1
    %s170 = scalar_select %p167, %s168, %s169
    %p173 = pneg %p167
    %p174 = scmp.eq.s32.totalorder %s11, 1
    %p175 = por %p173, %p174
    %p176 = scmp.ne.s32.totalorder %s168, %s171
    %p177 = scmp.eq.s32.totalorder %s11, 0
    %p178 = por %p176, %p177
    %p179 = scmp.ne.s32.totalorder %s168, %s171
    %p180 = scmp.eq.s32.totalorder %s16, 1
    %p181 = por %p179, %p180
    %p182 = scmp.ne.s32.totalorder %s171, %s172
    %p183 = scmp.eq.s32.totalorder %s16, 0
    %p184 = por %p182, %p183
    %p185 = scmp.ne.s32.totalorder %s171, %s172
    %p186 = scmp.eq.s32.totalorder %s17, 1
    %p187 = por %p185, %p186
    %p189 = scmp.ne.s32.totalorder %s172, %s188
    %p190 = scmp.eq.s32.totalorder %s17, 0
    %p191 = por %p189, %p190
    %p192 = scmp.le.s32.totalorder 1, %s11
    %p193 = scmp.lt.s32.totalorder %s11, 3
    %p194 = pnand %p192, %p193
    %p195 = pneg %p194
    // Predicated region
    $region9: #{cross_multi_headed_attention.1} parent=5 // pred_check
      _
    $region10: #{cross_multi_headed_attention.1} parent=5 // pred_check_branch
      %197 = sbr.rel (%p194) target = $region12
    $region11: #{cross_multi_headed_attention.1} parent=5 // pred_region
      %s198 = ssub.s32 %s11, 1
      // Predicated region
      $region13: #{cross_multi_headed_attention.1} parent=11 // pred_check
        %p199 = pneg %p135
      $region14: #{cross_multi_headed_attention.1} parent=11 // pred_check_branch
        %201 = sbr.rel (%p199) target = $region16
      $region15: #{cross_multi_headed_attention.1} parent=11 // pred_region
        _
      $region16: #{cross_multi_headed_attention.1} parent=11 // pred_fallthru
        _
      // Predicated region
      $region17: #{cross_multi_headed_attention.1} parent=11 // pred_check
        %p202 = pneg %p156
      $region18: #{cross_multi_headed_attention.1} parent=11 // pred_check_branch
        %204 = sbr.rel (%p202) target = $region20
      $region19: #{cross_multi_headed_attention.1} parent=11 // pred_region
        _
      $region20: #{cross_multi_headed_attention.1} parent=11 // pred_fallthru
        _
    $region12: #{cross_multi_headed_attention.1} parent=5 // pred_fallthru
      _
    %p205 = scmp.lt.s32.totalorder %s11, 2
    // Predicated region
    $region21: #{cross_multi_headed_attention.1} parent=5 // pred_check
      %p206 = pneg %p205
    $region22: #{cross_multi_headed_attention.1} parent=5 // pred_check_branch
      %208 = sbr.rel (%p206) target = $region24
    $region23: #{cross_multi_headed_attention.1} parent=5 // pred_region
      // Predicated region
      $region25: #{cross_multi_headed_attention.1} parent=23 // pred_check
        %p209 = pneg %p52
      $region26: #{cross_multi_headed_attention.1} parent=23 // pred_check_branch
        %211 = sbr.rel (%p209) target = $region28
      $region27: #{cross_multi_headed_attention.1} parent=23 // pred_region
        %s212 = smul.u32 2, %s19
        %p213 = scmp.lt.s32.totalorder %s18, 1
        %s214 = scalar_select %p213, %s18, 1
        %p215 = scmp.lt.s32.totalorder %s212, 1
        %s216 = scalar_select %p215, %s212, 1
        %s217 = smul.addr %s214, 8
        %s218 = sadd.s32 %s216, %s217
        %s219 = smul.addr %s218, 8
        %s220 = scalar_lea.vmem %s0, %s219
        %s221 = smul.u32 2, %s19
      $region28: #{cross_multi_headed_attention.1} parent=23 // pred_fallthru
        _
      // Predicated region
      $region29: #{cross_multi_headed_attention.1} parent=23 // pred_check
        %p222 = pneg %p80
      $region30: #{cross_multi_headed_attention.1} parent=23 // pred_check_branch
        %224 = sbr.rel (%p222) target = $region32
      $region31: #{cross_multi_headed_attention.1} parent=23 // pred_region
        %s225 = smul.u32 3, %s20
        %p226 = scmp.lt.s32.totalorder %s18, 1
        %s227 = scalar_select %p226, %s18, 1
        %p228 = scmp.lt.s32.totalorder %s225, 2
        %s229 = scalar_select %p228, %s225, 2
        %s230 = smul.addr %s227, 12
        %s231 = sadd.s32 %s229, %s230
        %s232 = smul.addr %s231, 8
        %s233 = scalar_lea.vmem %s1, %s232
        %s234 = smul.u32 3, %s20
      $region32: #{cross_multi_headed_attention.1} parent=23 // pred_fallthru
        _
      // Predicated region
      $region33: #{cross_multi_headed_attention.1} parent=23 // pred_check
        %p235 = pneg %p108
      $region34: #{cross_multi_headed_attention.1} parent=23 // pred_check_branch
        %237 = sbr.rel (%p235) target = $region36
      $region35: #{cross_multi_headed_attention.1} parent=23 // pred_region
        %s238 = smul.u32 3, %s20
        %p239 = scmp.lt.s32.totalorder %s18, 1
        %s240 = scalar_select %p239, %s18, 1
        %p241 = scmp.lt.s32.totalorder %s238, 2
        %s242 = scalar_select %p241, %s238, 2
        %s243 = smul.addr %s240, 12
        %s244 = sadd.s32 %s242, %s243
        %s245 = smul.addr %s244, 8
        %s246 = scalar_lea.vmem %s2, %s245
        %s247 = smul.u32 3, %s20
      $region36: #{cross_multi_headed_attention.1} parent=23 // pred_fallthru
        _
    $region24: #{cross_multi_headed_attention.1} parent=5 // pred_fallthru
      _
    %p248 = scmp.le.s32.totalorder 1, %s11
    %p249 = scmp.lt.s32.totalorder %s11, 3
    %p250 = pnand %p248, %p249
    %p251 = pneg %p250
    // Predicated region
    $region37: #{cross_multi_headed_attention.1} parent=5 // pred_check
      _
    $region38: #{cross_multi_headed_attention.1} parent=5 // pred_check_branch
      %253 = sbr.rel (%p250) target = $region40
    $region39: #{cross_multi_headed_attention.1} parent=5 // pred_region
      %s254 = ssub.s32 %s11, 1
      %s255 = smul.u32 2, %s22
      %p256 = scmp.lt.s32.totalorder %s21, 1
      %s257 = scalar_select %p256, %s21, 1
      %p258 = scmp.lt.s32.totalorder %s255, 1
      %s259 = scalar_select %p258, %s255, 1
      %s260 = smul.addr %s257, 8
      %s261 = sadd.s32 %s259, %s260
      %s262 = smul.addr %s261, 8
      %s263 = scalar_lea.vmem %s0, %s262
      %p264 = pneg %p58
      %p265 = pneg %p55
      %s266 = smul.u32 3, %s23
      %p267 = scmp.lt.s32.totalorder %s21, 1
      %s268 = scalar_select %p267, %s21, 1
      %p269 = scmp.lt.s32.totalorder %s266, 2
      %s270 = scalar_select %p269, %s266, 2
      %s271 = smul.addr %s268, 12
      %s272 = sadd.s32 %s270, %s271
      %s273 = smul.addr %s272, 8
      %s274 = scalar_lea.vmem %s1, %s273
      %p275 = pneg %p86
      %p276 = pneg %p83
      %s277 = smul.u32 3, %s23
      %p278 = scmp.lt.s32.totalorder %s21, 1
      %s279 = scalar_select %p278, %s21, 1
      %p280 = scmp.lt.s32.totalorder %s277, 2
      %s281 = scalar_select %p280, %s277, 2
      %s282 = smul.addr %s279, 12
      %s283 = sadd.s32 %s281, %s282
      %s284 = smul.addr %s283, 8
      %s285 = scalar_lea.vmem %s2, %s284
      %p286 = pneg %p114
      %p287 = pneg %p111
      %p288 = pneg %p135
      %p289 = pneg %p132
      %p290 = pneg %p156
      %p291 = pneg %p153
      %p292 = pneg %p184
      %p293 = pneg %p181
      %s294 = smul.u32 2, %s22
      %p295 = scmp.lt.s32.totalorder %s21, 1
      %s296 = scalar_select %p295, %s21, 1
      %p297 = scmp.lt.s32.totalorder %s294, 1
      %s298 = scalar_select %p297, %s294, 1
      %s299 = smul.addr %s296, 2
      %s300 = sadd.s32 %s298, %s299
      %s301 = smul.addr %s300, 8
      %s302 = scalar_lea.vmem %s5, %s301
      %s303 = smul.u32 2, %s22
      %p304 = scmp.lt.s32.totalorder %s21, 1
      %s305 = scalar_select %p304, %s21, 1
      %p306 = scmp.lt.s32.totalorder %s303, 1
      %s307 = scalar_select %p306, %s303, 1
      %s308 = smul.addr %s305, 8
      %s309 = sadd.s32 %s307, %s308
      %s310 = smul.addr %s309, 8
      %s311 = scalar_lea.vmem %s0, %s310
      %s312 = smul.u32 2, %s22
      %s313 = smul.u32 3, %s23
      %p314 = scmp.lt.s32.totalorder %s21, 1
      %s315 = scalar_select %p314, %s21, 1
      %p316 = scmp.lt.s32.totalorder %s313, 2
      %s317 = scalar_select %p316, %s313, 2
      %s318 = smul.addr %s315, 12
      %s319 = sadd.s32 %s317, %s318
      %s320 = smul.addr %s319, 8
      %s321 = scalar_lea.vmem %s1, %s320
      %s322 = smul.u32 3, %s23
      %s323 = smul.u32 3, %s23
      %p324 = scmp.lt.s32.totalorder %s21, 1
      %s325 = scalar_select %p324, %s21, 1
      %p326 = scmp.lt.s32.totalorder %s323, 2
      %s327 = scalar_select %p326, %s323, 2
      %s328 = smul.addr %s325, 12
      %s329 = sadd.s32 %s327, %s328
      %s330 = smul.addr %s329, 8
      %s331 = scalar_lea.vmem %s2, %s330
      %s332 = smul.u32 3, %s23
      %s333 = smul.u32 2, %s22
      %p334 = scmp.lt.s32.totalorder %s21, 1
      %s335 = scalar_select %p334, %s21, 1
      %p336 = scmp.lt.s32.totalorder %s333, 1
      %s337 = scalar_select %p336, %s333, 1
      %s338 = smul.addr %s335, 2
      %s339 = sadd.s32 %s337, %s338
      %s340 = smul.addr %s339, 8
      %s341 = scalar_lea.vmem %s5, %s340
      %s342 = smul.u32 2, %s22
      %p343 = scmp.eq.s32.totalorder %s23, 0
      // Predicated region
      $region41: #{cross_multi_headed_attention.1} parent=39 // pred_check
        %p344 = pneg %p343
      $region42: #{cross_multi_headed_attention.1} parent=39 // pred_check_branch
        %346 = sbr.rel (%p344) target = $region44
      $region43: #{cross_multi_headed_attention.1} parent=39 // pred_region
        %vm347 = vcmask 7168
        %348 = vst.msk [vmem:[#allocation2] sm:$0xff] %vm347, -inf
        %349 = vst.msk [vmem:[#allocation2 + $0x8] sm:$0xff] %vm347, -inf
        %350 = vst.msk [vmem:[#allocation2 + $0x10] sm:$0xff] %vm347, -inf
        %351 = vst.msk [vmem:[#allocation2 + $0x18] sm:$0xff] %vm347, -inf
        %352 = vst.msk [vmem:[#allocation2 + $0x20] sm:$0xff] %vm347, -inf
        %353 = vst.msk [vmem:[#allocation2 + $0x28] sm:$0xff] %vm347, -inf
        %354 = vst.msk [vmem:[#allocation2 + $0x30] sm:$0xff] %vm347, -inf
        %355 = vst.msk [vmem:[#allocation2 + $0x38] sm:$0xff] %vm347, -inf
        %356 = vst.msk [vmem:[#allocation3] sm:$0xff] %vm347, 0.0
        %357 = vst.msk [vmem:[#allocation3 + $0x8] sm:$0xff] %vm347, 0.0
        %358 = vst.msk [vmem:[#allocation3 + $0x10] sm:$0xff] %vm347, 0.0
        %359 = vst.msk [vmem:[#allocation3 + $0x18] sm:$0xff] %vm347, 0.0
        %360 = vst.msk [vmem:[#allocation3 + $0x20] sm:$0xff] %vm347, 0.0
        %361 = vst.msk [vmem:[#allocation3 + $0x28] sm:$0xff] %vm347, 0.0
        %362 = vst.msk [vmem:[#allocation3 + $0x30] sm:$0xff] %vm347, 0.0
        %363 = vst.msk [vmem:[#allocation3 + $0x38] sm:$0xff] %vm347, 0.0
        %vm364 = vcmask 261120
        %365 = vst.msk [vmem:[#allocation4] sm:$0xff] %vm364, 0.0
        %366 = vst.msk [vmem:[#allocation4 + $0x8] sm:$0xff] %vm364, 0.0
        %367 = vst.msk [vmem:[#allocation4 + $0x10] sm:$0xff] %vm364, 0.0
        %368 = vst.msk [vmem:[#allocation4 + $0x18] sm:$0xff] %vm364, 0.0
        %369 = vst.msk [vmem:[#allocation4 + $0x20] sm:$0xff] %vm364, 0.0
        %370 = vst.msk [vmem:[#allocation4 + $0x28] sm:$0xff] %vm364, 0.0
        %371 = vst.msk [vmem:[#allocation4 + $0x30] sm:$0xff] %vm364, 0.0
        %372 = vst.msk [vmem:[#allocation4 + $0x38] sm:$0xff] %vm364, 0.0
      $region44: #{cross_multi_headed_attention.1} parent=39 // pred_fallthru
        _
      %v373 = vld [vmem:[%s311] sm:$0xff]
      %v374 = vld [vmem:[%s311 + $0x8] sm:$0xff]
      %v375 = vld [vmem:[%s311 + $0x10] sm:$0xff]
      %v376 = vld [vmem:[%s311 + $0x18] sm:$0xff]
      %v377 = vld [vmem:[%s311 + $0x20] sm:$0xff]
      %v378 = vld [vmem:[%s311 + $0x28] sm:$0xff]
      %v379 = vld [vmem:[%s311 + $0x30] sm:$0xff]
      %v380 = vld [vmem:[%s311 + $0x38] sm:$0xff]
      %v381 = vld [vmem:[%s321] sm:$0xff]
      %v382 = vld [vmem:[%s321 + $0x8] sm:$0xff]
      %v383 = vld [vmem:[%s321 + $0x10] sm:$0xff]
      %v384 = vld [vmem:[%s321 + $0x18] sm:$0xff]
      %v385 = vld [vmem:[%s321 + $0x20] sm:$0xff]
      %v386 = vld [vmem:[%s321 + $0x28] sm:$0xff]
      %v387 = vld [vmem:[%s321 + $0x30] sm:$0xff]
      %v388 = vld [vmem:[%s321 + $0x38] sm:$0xff]
      %v389 = vld [vmem:[%s321 + $0x40] sm:$0xff]
      %v390 = vld [vmem:[%s321 + $0x48] sm:$0xff]
      %v391 = vld [vmem:[%s321 + $0x50] sm:$0xff]
      %v392 = vld [vmem:[%s321 + $0x58] sm:$0xff]
      %v393 = vld [vmem:[%s331] sm:$0xff]
      %v394 = vld [vmem:[%s331 + $0x8] sm:$0xff]
      %v395 = vld [vmem:[%s331 + $0x10] sm:$0xff]
      %v396 = vld [vmem:[%s331 + $0x18] sm:$0xff]
      %v397 = vld [vmem:[%s331 + $0x20] sm:$0xff]
      %v398 = vld [vmem:[%s331 + $0x28] sm:$0xff]
      %v399 = vld [vmem:[%s331 + $0x30] sm:$0xff]
      %v400 = vld [vmem:[%s331 + $0x38] sm:$0xff]
      %v401 = vld [vmem:[%s331 + $0x40] sm:$0xff]
      %v402 = vld [vmem:[%s331 + $0x48] sm:$0xff]
      %v403 = vld [vmem:[%s331 + $0x50] sm:$0xff]
      %v404 = vld [vmem:[%s331 + $0x58] sm:$0xff]
      %vm405 = vcmask 261120
      %v407 = vsel %vm405, %v373, 0
      %v410 = vsel %vm405, %v374, 0
      %v413 = vsel %vm405, %v381, 0
      %v416 = vsel %vm405, %v382, 0
      %v419 = vsel %vm405, %v383, 0
      %421 = vmatpush.xpose.msra.mxu0 0.0
      %422 = vmatpush.xpose.msra.mxu0 0.0
      %423 = vmatpush.xpose.msra.mxu0 0.0
      %424 = vmatpush.xpose.msra.mxu0 0.0
      %425 = vmatpush.xpose.msra.mxu0 0.0
      %426 = vmatpush.xpose.msra.mxu0 0.0
      %427 = vmatpush.xpose.msra.mxu0 0.0
      %428 = vmatpush.xpose.msra.mxu0 0.0
      %429 = vmatpush.xpose.msra.mxu0 0.0
      %430 = vmatpush.xpose.msra.mxu0 0.0
      %431 = vmatpush.xpose.msra.mxu0 0.0
      %432 = vmatpush.xpose.msra.mxu0 0.0
      %433 = vmatpush.xpose.msra.mxu0 0.0
      %434 = vmatpush.xpose.msra.mxu0 %v419
      %435 = vmatpush.xpose.msra.mxu0 %v416
      %436 = vmatpush.xpose.msra.mxu0 %v413
      %437 = vmatmul.f32.gmra.mxu0 %v407
      %v438 = vpop.f32.mrf.mxu0
      %v439 = vadd.f32 0.0, %v438
      %440 = vmatmul.f32.gmra.mxu0 %v410
      %v441 = vpop.f32.mrf.mxu0
      %v442 = vadd.f32 0.0, %v441
      %443 = vdwg.mxu0
      %v445 = vsel %vm405, %v375, 0
      %v448 = vsel %vm405, %v376, 0
      %v451 = vsel %vm405, %v384, 0
      %v454 = vsel %vm405, %v385, 0
      %v457 = vsel %vm405, %v386, 0
      %459 = vmatpush.xpose.msra.mxu0 0.0
      %460 = vmatpush.xpose.msra.mxu0 0.0
      %461 = vmatpush.xpose.msra.mxu0 0.0
      %462 = vmatpush.xpose.msra.mxu0 0.0
      %463 = vmatpush.xpose.msra.mxu0 0.0
      %464 = vmatpush.xpose.msra.mxu0 0.0
      %465 = vmatpush.xpose.msra.mxu0 0.0
      %466 = vmatpush.xpose.msra.mxu0 0.0
      %467 = vmatpush.xpose.msra.mxu0 0.0
      %468 = vmatpush.xpose.msra.mxu0 0.0
      %469 = vmatpush.xpose.msra.mxu0 0.0
      %470 = vmatpush.xpose.msra.mxu0 0.0
      %471 = vmatpush.xpose.msra.mxu0 0.0
      %472 = vmatpush.xpose.msra.mxu0 %v457
      %473 = vmatpush.xpose.msra.mxu0 %v454
      %474 = vmatpush.xpose.msra.mxu0 %v451
      %475 = vmatmul.f32.gmra.mxu0 %v445
      %v476 = vpop.f32.mrf.mxu0
      %v477 = vadd.f32 0.0, %v476
      %478 = vmatmul.f32.gmra.mxu0 %v448
      %v479 = vpop.f32.mrf.mxu0
      %v480 = vadd.f32 0.0, %v479
      %481 = vdwg.mxu0
      %v483 = vsel %vm405, %v377, 0
      %v486 = vsel %vm405, %v378, 0
      %v489 = vsel %vm405, %v387, 0
      %v492 = vsel %vm405, %v388, 0
      %v495 = vsel %vm405, %v389, 0
      %497 = vmatpush.xpose.msra.mxu0 0.0
      %498 = vmatpush.xpose.msra.mxu0 0.0
      %499 = vmatpush.xpose.msra.mxu0 0.0
      %500 = vmatpush.xpose.msra.mxu0 0.0
      %501 = vmatpush.xpose.msra.mxu0 0.0
      %502 = vmatpush.xpose.msra.mxu0 0.0
      %503 = vmatpush.xpose.msra.mxu0 0.0
      %504 = vmatpush.xpose.msra.mxu0 0.0
      %505 = vmatpush.xpose.msra.mxu0 0.0
      %506 = vmatpush.xpose.msra.mxu0 0.0
      %507 = vmatpush.xpose.msra.mxu0 0.0
      %508 = vmatpush.xpose.msra.mxu0 0.0
      %509 = vmatpush.xpose.msra.mxu0 0.0
      %510 = vmatpush.xpose.msra.mxu0 %v495
      %511 = vmatpush.xpose.msra.mxu0 %v492
      %512 = vmatpush.xpose.msra.mxu0 %v489
      %513 = vmatmul.f32.gmra.mxu0 %v483
      %v514 = vpop.f32.mrf.mxu0
      %v515 = vadd.f32 0.0, %v514
      %516 = vmatmul.f32.gmra.mxu0 %v486
      %v517 = vpop.f32.mrf.mxu0
      %v518 = vadd.f32 0.0, %v517
      %519 = vdwg.mxu0
      %v521 = vsel %vm405, %v379, 0
      %v524 = vsel %vm405, %v380, 0
      %v527 = vsel %vm405, %v390, 0
      %v530 = vsel %vm405, %v391, 0
      %v533 = vsel %vm405, %v392, 0
      %535 = vmatpush.xpose.msra.mxu0 0.0
      %536 = vmatpush.xpose.msra.mxu0 0.0
      %537 = vmatpush.xpose.msra.mxu0 0.0
      %538 = vmatpush.xpose.msra.mxu0 0.0
      %539 = vmatpush.xpose.msra.mxu0 0.0
      %540 = vmatpush.xpose.msra.mxu0 0.0
      %541 = vmatpush.xpose.msra.mxu0 0.0
      %542 = vmatpush.xpose.msra.mxu0 0.0
      %543 = vmatpush.xpose.msra.mxu0 0.0
      %544 = vmatpush.xpose.msra.mxu0 0.0
      %545 = vmatpush.xpose.msra.mxu0 0.0
      %546 = vmatpush.xpose.msra.mxu0 0.0
      %547 = vmatpush.xpose.msra.mxu0 0.0
      %548 = vmatpush.xpose.msra.mxu0 %v533
      %549 = vmatpush.xpose.msra.mxu0 %v530
      %550 = vmatpush.xpose.msra.mxu0 %v527
      %551 = vmatmul.f32.gmra.mxu0 %v521
      %v552 = vpop.f32.mrf.mxu0
      %v553 = vadd.f32 0.0, %v552
      %554 = vmatmul.f32.gmra.mxu0 %v524
      %v555 = vpop.f32.mrf.mxu0
      %v556 = vadd.f32 0.0, %v555
      %557 = vdwg.mxu0
      %s558 = smul.u32 %s23, 24
      %v559 = vlaneseq
      %v560 = vand.u32 %v559, 127
      %v561 = vstv %s558
      %v562 = vadd.s32 %v561, %v560
      %vm563 = vcmp.lt.s32.totalorder %v562, 20
      %v564 = vsel %vm563, 1, 0
      %vm565 = vcmp.eq.s32.totalorder %v564, 1
      %v566 = vsel %vm565, %v439, -1e+30
      %v567 = vsel %vm565, %v442, -1e+30
      %v568 = vsel %vm565, %v477, -1e+30
      %v569 = vsel %vm565, %v480, -1e+30
      %v570 = vsel %vm565, %v515, -1e+30
      %v571 = vsel %vm565, %v518, -1e+30
      %v572 = vsel %vm565, %v553, -1e+30
      %v573 = vsel %vm565, %v556, -1e+30
      %v574 = vld [vmem:[#allocation2] sm:$0xff]
      %v575 = vld [vmem:[#allocation2 + $0x8] sm:$0xff]
      %v576 = vld [vmem:[#allocation2 + $0x10] sm:$0xff]
      %v577 = vld [vmem:[#allocation2 + $0x18] sm:$0xff]
      %v578 = vld [vmem:[#allocation2 + $0x20] sm:$0xff]
      %v579 = vld [vmem:[#allocation2 + $0x28] sm:$0xff]
      %v580 = vld [vmem:[#allocation2 + $0x30] sm:$0xff]
      %v581 = vld [vmem:[#allocation2 + $0x38] sm:$0xff]
      %vm582 = vcmask 195584
      %v583 = vsel %vm582, %v566, -inf
      %584 = vmax.xlane.f32.xlu0 %v583
      %v585 = vpop.xlane.xlu0 %584
      %v586 = vsel %vm582, %v567, -inf
      %587 = vmax.xlane.f32.xlu0 %v586
      %v588 = vpop.xlane.xlu0 %587
      %v589 = vsel %vm582, %v568, -inf
      %590 = vmax.xlane.f32.xlu0 %v589
      %v591 = vpop.xlane.xlu0 %590
      %v592 = vsel %vm582, %v569, -inf
      %593 = vmax.xlane.f32.xlu0 %v592
      %v594 = vpop.xlane.xlu0 %593
      %v595 = vsel %vm582, %v570, -inf
      %596 = vmax.xlane.f32.xlu0 %v595
      %v597 = vpop.xlane.xlu0 %596
      %v598 = vsel %vm582, %v571, -inf
      %599 = vmax.xlane.f32.xlu0 %v598
      %v600 = vpop.xlane.xlu0 %599
      %v601 = vsel %vm582, %v572, -inf
      %602 = vmax.xlane.f32.xlu0 %v601
      %v603 = vpop.xlane.xlu0 %602
      %v604 = vsel %vm582, %v573, -inf
      %605 = vmax.xlane.f32.xlu0 %v604
      %v606 = vpop.xlane.xlu0 %605
      %v607 = vmax.f32 %v574, %v585
      %v608 = vmax.f32 %v575, %v588
      %v609 = vmax.f32 %v576, %v591
      %v610 = vmax.f32 %v577, %v594
      %v611 = vmax.f32 %v578, %v597
      %v612 = vmax.f32 %v579, %v600
      %v613 = vmax.f32 %v580, %v603
      %v614 = vmax.f32 %v581, %v606
      %v615 = vsub.f32 %v574, %v607
      %v616 = vsub.f32 %v575, %v608
      %v617 = vsub.f32 %v576, %v609
      %v618 = vsub.f32 %v577, %v610
      %v619 = vsub.f32 %v578, %v611
      %v620 = vsub.f32 %v579, %v612
      %v621 = vsub.f32 %v580, %v613
      %v622 = vsub.f32 %v581, %v614
      %v623 = vmul.f32 %v615, 1.442695
      %v624 = vpow.pop %v623
      %v625 = vmul.f32 %v616, 1.442695
      %v626 = vpow.pop %v625
      %v627 = vmul.f32 %v617, 1.442695
      %v628 = vpow.pop %v627
      %v629 = vmul.f32 %v618, 1.442695
      %v630 = vpow.pop %v629
      %v631 = vmul.f32 %v619, 1.442695
      %v632 = vpow.pop %v631
      %v633 = vmul.f32 %v620, 1.442695
      %v634 = vpow.pop %v633
      %v635 = vmul.f32 %v621, 1.442695
      %v636 = vpow.pop %v635
      %v637 = vmul.f32 %v622, 1.442695
      %v638 = vpow.pop %v637
      %640 = vset.pattern.permute.xlu0 0
      %641 = vperm.xlu0 %640, %v607
      %v642 = vpop.permute.xlu0 %641
      %645 = vset.pattern.permute.xlu0 0
      %646 = vperm.xlu0 %645, %v608
      %v647 = vpop.permute.xlu0 %646
      %650 = vset.pattern.permute.xlu0 0
      %651 = vperm.xlu0 %650, %v609
      %v652 = vpop.permute.xlu0 %651
      %655 = vset.pattern.permute.xlu0 0
      %656 = vperm.xlu0 %655, %v610
      %v657 = vpop.permute.xlu0 %656
      %660 = vset.pattern.permute.xlu0 0
      %661 = vperm.xlu0 %660, %v611
      %v662 = vpop.permute.xlu0 %661
      %665 = vset.pattern.permute.xlu0 0
      %666 = vperm.xlu0 %665, %v612
      %v667 = vpop.permute.xlu0 %666
      %670 = vset.pattern.permute.xlu0 0
      %671 = vperm.xlu0 %670, %v613
      %v672 = vpop.permute.xlu0 %671
      %675 = vset.pattern.permute.xlu0 0
      %676 = vperm.xlu0 %675, %v614
      %v677 = vpop.permute.xlu0 %676
      %v679 = vsub.f32 %v566, %v642
      %v680 = vsub.f32 %v567, %v647
      %v681 = vsub.f32 %v568, %v652
      %v682 = vsub.f32 %v569, %v657
      %v683 = vsub.f32 %v570, %v662
      %v684 = vsub.f32 %v571, %v667
      %v685 = vsub.f32 %v572, %v672
      %v686 = vsub.f32 %v573, %v677
      %v687 = vmul.f32 %v679, 1.442695
      %v688 = vpow.pop %v687
      %v689 = vmul.f32 %v680, 1.442695
      %v690 = vpow.pop %v689
      %v691 = vmul.f32 %v681, 1.442695
      %v692 = vpow.pop %v691
      %v693 = vmul.f32 %v682, 1.442695
      %v694 = vpow.pop %v693
      %v695 = vmul.f32 %v683, 1.442695
      %v696 = vpow.pop %v695
      %v697 = vmul.f32 %v684, 1.442695
      %v698 = vpow.pop %v697
      %v699 = vmul.f32 %v685, 1.442695
      %v700 = vpow.pop %v699
      %v701 = vmul.f32 %v686, 1.442695
      %v702 = vpow.pop %v701
      %v703 = vld [vmem:[#allocation3] sm:$0xff]
      %v704 = vld [vmem:[#allocation3 + $0x8] sm:$0xff]
      %v705 = vld [vmem:[#allocation3 + $0x10] sm:$0xff]
      %v706 = vld [vmem:[#allocation3 + $0x18] sm:$0xff]
      %v707 = vld [vmem:[#allocation3 + $0x20] sm:$0xff]
      %v708 = vld [vmem:[#allocation3 + $0x28] sm:$0xff]
      %v709 = vld [vmem:[#allocation3 + $0x30] sm:$0xff]
      %v710 = vld [vmem:[#allocation3 + $0x38] sm:$0xff]
      %v711 = vmul.f32 %v624, %v703
      %v712 = vmul.f32 %v626, %v704
      %v713 = vmul.f32 %v628, %v705
      %v714 = vmul.f32 %v630, %v706
      %v715 = vmul.f32 %v632, %v707
      %v716 = vmul.f32 %v634, %v708
      %v717 = vmul.f32 %v636, %v709
      %v718 = vmul.f32 %v638, %v710
      %v719 = vsel %vm582, %v688, 0.0
      %720 = vadd.xlane.f32.xlu0 %v719
      %v721 = vpop.xlane.xlu0 %720
      %v722 = vsel %vm582, %v690, 0.0
      %723 = vadd.xlane.f32.xlu0 %v722
      %v724 = vpop.xlane.xlu0 %723
      %v725 = vsel %vm582, %v692, 0.0
      %726 = vadd.xlane.f32.xlu0 %v725
      %v727 = vpop.xlane.xlu0 %726
      %v728 = vsel %vm582, %v694, 0.0
      %729 = vadd.xlane.f32.xlu0 %v728
      %v730 = vpop.xlane.xlu0 %729
      %v731 = vsel %vm582, %v696, 0.0
      %732 = vadd.xlane.f32.xlu0 %v731
      %v733 = vpop.xlane.xlu0 %732
      %v734 = vsel %vm582, %v698, 0.0
      %735 = vadd.xlane.f32.xlu0 %v734
      %v736 = vpop.xlane.xlu0 %735
      %v737 = vsel %vm582, %v700, 0.0
      %738 = vadd.xlane.f32.xlu0 %v737
      %v739 = vpop.xlane.xlu0 %738
      %v740 = vsel %vm582, %v702, 0.0
      %741 = vadd.xlane.f32.xlu0 %v740
      %v742 = vpop.xlane.xlu0 %741
      %v743 = vadd.f32 %v711, %v721
      %v744 = vadd.f32 %v712, %v724
      %v745 = vadd.f32 %v713, %v727
      %v746 = vadd.f32 %v714, %v730
      %v747 = vadd.f32 %v715, %v733
      %v748 = vadd.f32 %v716, %v736
      %v749 = vadd.f32 %v717, %v739
      %v750 = vadd.f32 %v718, %v742
      %vm751 = vcmask 7168
      %752 = vst.msk [vmem:[#allocation3] sm:$0xff] %vm751, %v743
      %753 = vst.msk [vmem:[#allocation3 + $0x8] sm:$0xff] %vm751, %v744
      %754 = vst.msk [vmem:[#allocation3 + $0x10] sm:$0xff] %vm751, %v745
      %755 = vst.msk [vmem:[#allocation3 + $0x18] sm:$0xff] %vm751, %v746
      %756 = vst.msk [vmem:[#allocation3 + $0x20] sm:$0xff] %vm751, %v747
      %757 = vst.msk [vmem:[#allocation3 + $0x28] sm:$0xff] %vm751, %v748
      %758 = vst.msk [vmem:[#allocation3 + $0x30] sm:$0xff] %vm751, %v749
      %759 = vst.msk [vmem:[#allocation3 + $0x38] sm:$0xff] %vm751, %v750
      %v760 = vld [vmem:[#allocation4] sm:$0xff]
      %v761 = vld [vmem:[#allocation4 + $0x8] sm:$0xff]
      %v762 = vld [vmem:[#allocation4 + $0x10] sm:$0xff]
      %v763 = vld [vmem:[#allocation4 + $0x18] sm:$0xff]
      %v764 = vld [vmem:[#allocation4 + $0x20] sm:$0xff]
      %v765 = vld [vmem:[#allocation4 + $0x28] sm:$0xff]
      %v766 = vld [vmem:[#allocation4 + $0x30] sm:$0xff]
      %v767 = vld [vmem:[#allocation4 + $0x38] sm:$0xff]
      %769 = vset.pattern.permute.xlu0 0
      %770 = vperm.xlu0 %769, %v624
      %v771 = vpop.permute.xlu0 %770
      %774 = vset.pattern.permute.xlu0 0
      %775 = vperm.xlu0 %774, %v626
      %v776 = vpop.permute.xlu0 %775
      %779 = vset.pattern.permute.xlu0 0
      %780 = vperm.xlu0 %779, %v628
      %v781 = vpop.permute.xlu0 %780
      %784 = vset.pattern.permute.xlu0 0
      %785 = vperm.xlu0 %784, %v630
      %v786 = vpop.permute.xlu0 %785
      %789 = vset.pattern.permute.xlu0 0
      %790 = vperm.xlu0 %789, %v632
      %v791 = vpop.permute.xlu0 %790
      %794 = vset.pattern.permute.xlu0 0
      %795 = vperm.xlu0 %794, %v634
      %v796 = vpop.permute.xlu0 %795
      %799 = vset.pattern.permute.xlu0 0
      %800 = vperm.xlu0 %799, %v636
      %v801 = vpop.permute.xlu0 %800
      %804 = vset.pattern.permute.xlu0 0
      %805 = vperm.xlu0 %804, %v638
      %v806 = vpop.permute.xlu0 %805
      %v808 = vmul.f32 %v771, %v760
      %v809 = vmul.f32 %v776, %v761
      %v810 = vmul.f32 %v781, %v762
      %v811 = vmul.f32 %v786, %v763
      %v812 = vmul.f32 %v791, %v764
      %v813 = vmul.f32 %v796, %v765
      %v814 = vmul.f32 %v801, %v766
      %v815 = vmul.f32 %v806, %v767
      %v817 = vsel %vm582, %v688, 0
      %v820 = vsel %vm582, %v690, 0
      %822 = vmatpush.msra.mxu0 0.0
      %823 = vmatpush.msra.mxu0 0.0
      %824 = vmatpush.msra.mxu0 0.0
      %825 = vmatpush.msra.mxu0 0.0
      %826 = vmatpush.msra.mxu0 0.0
      %827 = vmatpush.msra.mxu0 0.0
      %828 = vmatpush.msra.mxu0 0.0
      %829 = vmatpush.msra.mxu0 0.0
      %830 = vmatpush.msra.mxu0 0.0
      %831 = vmatpush.msra.mxu0 0.0
      %832 = vmatpush.msra.mxu0 0.0
      %833 = vmatpush.msra.mxu0 0.0
      %834 = vmatpush.msra.mxu0 0.0
      %835 = vmatpush.msra.mxu0 %v395
      %836 = vmatpush.msra.mxu0 %v394
      %837 = vmatpush.msra.mxu0 %v393
      %838 = vmatmul.f32.gmra.mxu0 %v817
      %v839 = vpop.f32.mrf.mxu0
      %v840 = vadd.f32 0.0, %v839
      %841 = vmatmul.f32.gmra.mxu0 %v820
      %v842 = vpop.f32.mrf.mxu0
      %v843 = vadd.f32 0.0, %v842
      %844 = vdwg.mxu0
      %v846 = vsel %vm582, %v692, 0
      %v849 = vsel %vm582, %v694, 0
      %851 = vmatpush.msra.mxu0 0.0
      %852 = vmatpush.msra.mxu0 0.0
      %853 = vmatpush.msra.mxu0 0.0
      %854 = vmatpush.msra.mxu0 0.0
      %855 = vmatpush.msra.mxu0 0.0
      %856 = vmatpush.msra.mxu0 0.0
      %857 = vmatpush.msra.mxu0 0.0
      %858 = vmatpush.msra.mxu0 0.0
      %859 = vmatpush.msra.mxu0 0.0
      %860 = vmatpush.msra.mxu0 0.0
      %861 = vmatpush.msra.mxu0 0.0
      %862 = vmatpush.msra.mxu0 0.0
      %863 = vmatpush.msra.mxu0 0.0
      %864 = vmatpush.msra.mxu0 %v398
      %865 = vmatpush.msra.mxu0 %v397
      %866 = vmatpush.msra.mxu0 %v396
      %867 = vmatmul.f32.gmra.mxu0 %v846
      %v868 = vpop.f32.mrf.mxu0
      %v869 = vadd.f32 0.0, %v868
      %870 = vmatmul.f32.gmra.mxu0 %v849
      %v871 = vpop.f32.mrf.mxu0
      %v872 = vadd.f32 0.0, %v871
      %873 = vdwg.mxu0
      %v875 = vsel %vm582, %v696, 0
      %v878 = vsel %vm582, %v698, 0
      %880 = vmatpush.msra.mxu0 0.0
      %881 = vmatpush.msra.mxu0 0.0
      %882 = vmatpush.msra.mxu0 0.0
      %883 = vmatpush.msra.mxu0 0.0
      %884 = vmatpush.msra.mxu0 0.0
      %885 = vmatpush.msra.mxu0 0.0
      %886 = vmatpush.msra.mxu0 0.0
      %887 = vmatpush.msra.mxu0 0.0
      %888 = vmatpush.msra.mxu0 0.0
      %889 = vmatpush.msra.mxu0 0.0
      %890 = vmatpush.msra.mxu0 0.0
      %891 = vmatpush.msra.mxu0 0.0
      %892 = vmatpush.msra.mxu0 0.0
      %893 = vmatpush.msra.mxu0 %v401
      %894 = vmatpush.msra.mxu0 %v400
      %895 = vmatpush.msra.mxu0 %v399
      %896 = vmatmul.f32.gmra.mxu0 %v875
      %v897 = vpop.f32.mrf.mxu0
      %v898 = vadd.f32 0.0, %v897
      %899 = vmatmul.f32.gmra.mxu0 %v878
      %v900 = vpop.f32.mrf.mxu0
      %v901 = vadd.f32 0.0, %v900
      %902 = vdwg.mxu0
      %v904 = vsel %vm582, %v700, 0
      %v907 = vsel %vm582, %v702, 0
      %909 = vmatpush.msra.mxu0 0.0
      %910 = vmatpush.msra.mxu0 0.0
      %911 = vmatpush.msra.mxu0 0.0
      %912 = vmatpush.msra.mxu0 0.0
      %913 = vmatpush.msra.mxu0 0.0
      %914 = vmatpush.msra.mxu0 0.0
      %915 = vmatpush.msra.mxu0 0.0
      %916 = vmatpush.msra.mxu0 0.0
      %917 = vmatpush.msra.mxu0 0.0
      %918 = vmatpush.msra.mxu0 0.0
      %919 = vmatpush.msra.mxu0 0.0
      %920 = vmatpush.msra.mxu0 0.0
      %921 = vmatpush.msra.mxu0 0.0
      %922 = vmatpush.msra.mxu0 %v404
      %923 = vmatpush.msra.mxu0 %v403
      %924 = vmatpush.msra.mxu0 %v402
      %925 = vmatmul.f32.gmra.mxu0 %v904
      %v926 = vpop.f32.mrf.mxu0
      %v927 = vadd.f32 0.0, %v926
      %928 = vmatmul.f32.gmra.mxu0 %v907
      %v929 = vpop.f32.mrf.mxu0
      %v930 = vadd.f32 0.0, %v929
      %931 = vdwg.mxu0
      %v932 = vadd.f32 %v808, %v840
      %v933 = vadd.f32 %v809, %v843
      %v934 = vadd.f32 %v810, %v869
      %v935 = vadd.f32 %v811, %v872
      %v936 = vadd.f32 %v812, %v898
      %v937 = vadd.f32 %v813, %v901
      %v938 = vadd.f32 %v814, %v927
      %v939 = vadd.f32 %v815, %v930
      %940 = vst.msk [vmem:[#allocation4] sm:$0xff] %vm405, %v932
      %941 = vst.msk [vmem:[#allocation4 + $0x8] sm:$0xff] %vm405, %v933
      %942 = vst.msk [vmem:[#allocation4 + $0x10] sm:$0xff] %vm405, %v934
      %943 = vst.msk [vmem:[#allocation4 + $0x18] sm:$0xff] %vm405, %v935
      %944 = vst.msk [vmem:[#allocation4 + $0x20] sm:$0xff] %vm405, %v936
      %945 = vst.msk [vmem:[#allocation4 + $0x28] sm:$0xff] %vm405, %v937
      %946 = vst.msk [vmem:[#allocation4 + $0x30] sm:$0xff] %vm405, %v938
      %947 = vst.msk [vmem:[#allocation4 + $0x38] sm:$0xff] %vm405, %v939
      %948 = vst.msk [vmem:[#allocation2] sm:$0xff] %vm751, %v607
      %949 = vst.msk [vmem:[#allocation2 + $0x8] sm:$0xff] %vm751, %v608
      %950 = vst.msk [vmem:[#allocation2 + $0x10] sm:$0xff] %vm751, %v609
      %951 = vst.msk [vmem:[#allocation2 + $0x18] sm:$0xff] %vm751, %v610
      %952 = vst.msk [vmem:[#allocation2 + $0x20] sm:$0xff] %vm751, %v611
      %953 = vst.msk [vmem:[#allocation2 + $0x28] sm:$0xff] %vm751, %v612
      %954 = vst.msk [vmem:[#allocation2 + $0x30] sm:$0xff] %vm751, %v613
      %955 = vst.msk [vmem:[#allocation2 + $0x38] sm:$0xff] %vm751, %v614
      // Predicated region
      $region45: #{cross_multi_headed_attention.1} parent=39 // pred_check
        %p956 = pneg %p343
      $region46: #{cross_multi_headed_attention.1} parent=39 // pred_check_branch
        %958 = sbr.rel (%p956) target = $region48
      $region47: #{cross_multi_headed_attention.1} parent=39 // pred_region
        %v959 = vld [vmem:[#allocation3] sm:$0xff]
        %v960 = vld [vmem:[#allocation3 + $0x8] sm:$0xff]
        %v961 = vrcp.pop %v959
        %v962 = vrcp.pop %v960
        %v963 = vld [vmem:[#allocation4] sm:$0xff]
        %v964 = vld [vmem:[#allocation4 + $0x8] sm:$0xff]
        %966 = vset.pattern.permute.xlu0 0
        %967 = vperm.xlu0 %966, %v961
        %v968 = vpop.permute.xlu0 %967
        %971 = vset.pattern.permute.xlu0 0
        %972 = vperm.xlu0 %971, %v962
        %v973 = vpop.permute.xlu0 %972
        %v975 = vmul.f32 %v963, %v968
        %v976 = vmul.f32 %v964, %v973
        %v977 = vld [vmem:[%s3] sm:$0xff]
        %v978 = vld [vmem:[%s3 + $0x8] sm:$0xff]
        %v979 = vld [vmem:[%s3 + $0x10] sm:$0xff]
        %v980 = vld [vmem:[%s3 + $0x18] sm:$0xff]
        %s981 = scalar_lea.vmem [#allocation3], 16
        %v982 = vld [vmem:[%s981] sm:$0xff]
        %v983 = vld [vmem:[%s981 + $0x8] sm:$0xff]
        %v984 = vrcp.pop %v982
        %v985 = vrcp.pop %v983
        %s986 = scalar_lea.vmem [#allocation4], 16
        %v987 = vld [vmem:[%s986] sm:$0xff]
        %v988 = vld [vmem:[%s986 + $0x8] sm:$0xff]
        %990 = vset.pattern.permute.xlu0 0
        %991 = vperm.xlu0 %990, %v984
        %v992 = vpop.permute.xlu0 %991
        %995 = vset.pattern.permute.xlu0 0
        %996 = vperm.xlu0 %995, %v985
        %v997 = vpop.permute.xlu0 %996
        %v999 = vmul.f32 %v987, %v992
        %v1000 = vmul.f32 %v988, %v997
        %s1001 = scalar_lea.vmem %s3, 32
        %v1002 = vld [vmem:[%s1001] sm:$0xff]
        %v1003 = vld [vmem:[%s1001 + $0x8] sm:$0xff]
        %v1004 = vld [vmem:[%s1001 + $0x10] sm:$0xff]
        %v1005 = vld [vmem:[%s1001 + $0x18] sm:$0xff]
        %v1007 = vsel %vm405, %v999, 0
        %v1010 = vsel %vm405, %v1000, 0
        %1012 = vmatpush.msra.mxu0 0.0
        %1013 = vmatpush.msra.mxu0 0.0
        %1014 = vmatpush.msra.mxu0 0.0
        %1015 = vmatpush.msra.mxu0 0.0
        %1016 = vmatpush.msra.mxu0 0.0
        %1017 = vmatpush.msra.mxu0 0.0
        %1018 = vmatpush.msra.mxu0 0.0
        %1019 = vmatpush.msra.mxu0 0.0
        %1020 = vmatpush.msra.mxu0 0.0
        %1021 = vmatpush.msra.mxu0 0.0
        %1022 = vmatpush.msra.mxu0 0.0
        %1023 = vmatpush.msra.mxu0 0.0
        %1024 = vmatpush.msra.mxu0 %v1005
        %1025 = vmatpush.msra.mxu0 %v1004
        %1026 = vmatpush.msra.mxu0 %v1003
        %1027 = vmatpush.msra.mxu0 %v1002
        %1028 = vmatmul.f32.gmra.mxu0 %v1007
        %v1029 = vpop.f32.mrf.mxu0
        %v1030 = vadd.f32 0.0, %v1029
        %1031 = vmatmul.f32.gmra.mxu0 %v1010
        %v1032 = vpop.f32.mrf.mxu0
        %v1033 = vadd.f32 0.0, %v1032
        %1034 = vdwg.mxu0
        %v1036 = vsel %vm405, %v975, 0
        %v1039 = vsel %vm405, %v976, 0
        %1041 = vmatpush.msra.mxu0 0.0
        %1042 = vmatpush.msra.mxu0 0.0
        %1043 = vmatpush.msra.mxu0 0.0
        %1044 = vmatpush.msra.mxu0 0.0
        %1045 = vmatpush.msra.mxu0 0.0
        %1046 = vmatpush.msra.mxu0 0.0
        %1047 = vmatpush.msra.mxu0 0.0
        %1048 = vmatpush.msra.mxu0 0.0
        %1049 = vmatpush.msra.mxu0 0.0
        %1050 = vmatpush.msra.mxu0 0.0
        %1051 = vmatpush.msra.mxu0 0.0
        %1052 = vmatpush.msra.mxu0 0.0
        %1053 = vmatpush.msra.mxu0 %v980
        %1054 = vmatpush.msra.mxu0 %v979
        %1055 = vmatpush.msra.mxu0 %v978
        %1056 = vmatpush.msra.mxu0 %v977
        %1057 = vmatmul.f32.gmra.mxu0 %v1036
        %v1058 = vpop.f32.mrf.mxu0
        %v1059 = vadd.f32 %v1030, %v1058
        %1060 = vmatmul.f32.gmra.mxu0 %v1039
        %v1061 = vpop.f32.mrf.mxu0
        %v1062 = vadd.f32 %v1033, %v1061
        %1063 = vdwg.mxu0
        %s1064 = scalar_lea.vmem [#allocation3], 32
        %v1065 = vld [vmem:[%s1064] sm:$0xff]
        %v1066 = vld [vmem:[%s1064 + $0x8] sm:$0xff]
        %v1067 = vrcp.pop %v1065
        %v1068 = vrcp.pop %v1066
        %s1069 = scalar_lea.vmem [#allocation4], 32
        %v1070 = vld [vmem:[%s1069] sm:$0xff]
        %v1071 = vld [vmem:[%s1069 + $0x8] sm:$0xff]
        %1073 = vset.pattern.permute.xlu0 0
        %1074 = vperm.xlu0 %1073, %v1067
        %v1075 = vpop.permute.xlu0 %1074
        %1078 = vset.pattern.permute.xlu0 0
        %1079 = vperm.xlu0 %1078, %v1068
        %v1080 = vpop.permute.xlu0 %1079
        %v1082 = vmul.f32 %v1070, %v1075
        %v1083 = vmul.f32 %v1071, %v1080
        %s1084 = scalar_lea.vmem %s3, 64
        %v1085 = vld [vmem:[%s1084] sm:$0xff]
        %v1086 = vld [vmem:[%s1084 + $0x8] sm:$0xff]
        %v1087 = vld [vmem:[%s1084 + $0x10] sm:$0xff]
        %v1088 = vld [vmem:[%s1084 + $0x18] sm:$0xff]
        %v1090 = vsel %vm405, %v1082, 0
        %v1093 = vsel %vm405, %v1083, 0
        %1095 = vmatpush.msra.mxu0 0.0
        %1096 = vmatpush.msra.mxu0 0.0
        %1097 = vmatpush.msra.mxu0 0.0
        %1098 = vmatpush.msra.mxu0 0.0
        %1099 = vmatpush.msra.mxu0 0.0
        %1100 = vmatpush.msra.mxu0 0.0
        %1101 = vmatpush.msra.mxu0 0.0
        %1102 = vmatpush.msra.mxu0 0.0
        %1103 = vmatpush.msra.mxu0 0.0
        %1104 = vmatpush.msra.mxu0 0.0
        %1105 = vmatpush.msra.mxu0 0.0
        %1106 = vmatpush.msra.mxu0 0.0
        %1107 = vmatpush.msra.mxu0 %v1088
        %1108 = vmatpush.msra.mxu0 %v1087
        %1109 = vmatpush.msra.mxu0 %v1086
        %1110 = vmatpush.msra.mxu0 %v1085
        %1111 = vmatmul.f32.gmra.mxu0 %v1090
        %v1112 = vpop.f32.mrf.mxu0
        %v1113 = vadd.f32 0.0, %v1112
        %1114 = vmatmul.f32.gmra.mxu0 %v1093
        %v1115 = vpop.f32.mrf.mxu0
        %v1116 = vadd.f32 0.0, %v1115
        %1117 = vdwg.mxu0
        %v1118 = vadd.f32 %v1059, %v1113
        %v1119 = vadd.f32 %v1062, %v1116
        %s1120 = scalar_lea.vmem [#allocation3], 48
        %v1121 = vld [vmem:[%s1120] sm:$0xff]
        %v1122 = vld [vmem:[%s1120 + $0x8] sm:$0xff]
        %v1123 = vrcp.pop %v1121
        %v1124 = vrcp.pop %v1122
        %s1125 = scalar_lea.vmem [#allocation4], 48
        %v1126 = vld [vmem:[%s1125] sm:$0xff]
        %v1127 = vld [vmem:[%s1125 + $0x8] sm:$0xff]
        %1129 = vset.pattern.permute.xlu0 0
        %1130 = vperm.xlu0 %1129, %v1123
        %v1131 = vpop.permute.xlu0 %1130
        %1134 = vset.pattern.permute.xlu0 0
        %1135 = vperm.xlu0 %1134, %v1124
        %v1136 = vpop.permute.xlu0 %1135
        %v1138 = vmul.f32 %v1126, %v1131
        %v1139 = vmul.f32 %v1127, %v1136
        %s1140 = scalar_lea.vmem %s3, 96
        %v1141 = vld [vmem:[%s1140] sm:$0xff]
        %v1142 = vld [vmem:[%s1140 + $0x8] sm:$0xff]
        %v1143 = vld [vmem:[%s1140 + $0x10] sm:$0xff]
        %v1144 = vld [vmem:[%s1140 + $0x18] sm:$0xff]
        %v1146 = vsel %vm405, %v1138, 0
        %v1149 = vsel %vm405, %v1139, 0
        %1151 = vmatpush.msra.mxu0 0.0
        %1152 = vmatpush.msra.mxu0 0.0
        %1153 = vmatpush.msra.mxu0 0.0
        %1154 = vmatpush.msra.mxu0 0.0
        %1155 = vmatpush.msra.mxu0 0.0
        %1156 = vmatpush.msra.mxu0 0.0
        %1157 = vmatpush.msra.mxu0 0.0
        %1158 = vmatpush.msra.mxu0 0.0
        %1159 = vmatpush.msra.mxu0 0.0
        %1160 = vmatpush.msra.mxu0 0.0
        %1161 = vmatpush.msra.mxu0 0.0
        %1162 = vmatpush.msra.mxu0 0.0
        %1163 = vmatpush.msra.mxu0 %v1144
        %1164 = vmatpush.msra.mxu0 %v1143
        %1165 = vmatpush.msra.mxu0 %v1142
        %1166 = vmatpush.msra.mxu0 %v1141
        %1167 = vmatmul.f32.gmra.mxu0 %v1146
        %v1168 = vpop.f32.mrf.mxu0
        %v1169 = vadd.f32 0.0, %v1168
        %1170 = vmatmul.f32.gmra.mxu0 %v1149
        %v1171 = vpop.f32.mrf.mxu0
        %v1172 = vadd.f32 0.0, %v1171
        %1173 = vdwg.mxu0
        %v1174 = vadd.f32 %v1118, %v1169
        %v1175 = vadd.f32 %v1119, %v1172
        %v1176 = vld [vmem:[%s4] sm:$0x1]
        %v1178 = vperm.slane %v1176, 0
        %v1180 = vadd.f32 %v1174, %v1178
        %v1181 = vadd.f32 %v1175, %v1178
        %1182 = vst [vmem:[%s341] sm:$0xff] %v1180
        %1183 = vst [vmem:[%s341 + $0x8] sm:$0xff] %v1181
      $region48: #{cross_multi_headed_attention.1} parent=39 // pred_fallthru
        _
      %s1184 = smul.u32 2, %s22
      %p1185 = scmp.lt.s32.totalorder %s21, 1
      %s1186 = scalar_select %p1185, %s21, 1
      %p1187 = scmp.lt.s32.totalorder %s1184, 1
      %s1188 = scalar_select %p1187, %s1184, 1
      %s1189 = smul.addr %s1186, 2
      %s1190 = sadd.s32 %s1188, %s1189
      %s1191 = smul.addr %s1190, 8
      %s1192 = scalar_lea.vmem %s5, %s1191
      // Predicated region
      $region49: #{cross_multi_headed_attention.1} parent=39 // pred_check
        %p1193 = pneg %p181
      $region50: #{cross_multi_headed_attention.1} parent=39 // pred_check_branch
        %1195 = sbr.rel (%p1193) target = $region52
      $region51: #{cross_multi_headed_attention.1} parent=39 // pred_region
        %s1196 = smul.u32 2, %s22
      $region52: #{cross_multi_headed_attention.1} parent=39 // pred_fallthru
        _
    $region40: #{cross_multi_headed_attention.1} parent=5 // pred_fallthru
      _
    %p1197 = scmp.le.s32.totalorder 2, %s11
    // Predicated region
    $region53: #{cross_multi_headed_attention.1} parent=5 // pred_check
      %p1198 = pneg %p1197
    $region54: #{cross_multi_headed_attention.1} parent=5 // pred_check_branch
      %1200 = sbr.rel (%p1198) target = $region56
    $region55: #{cross_multi_headed_attention.1} parent=5 // pred_region
      %s1201 = ssub.s32 %s11, 2
      // Predicated region
      $region57: #{cross_multi_headed_attention.1} parent=55 // pred_check
        %p1202 = pneg %p187
      $region58: #{cross_multi_headed_attention.1} parent=55 // pred_check_branch
        %1204 = sbr.rel (%p1202) target = $region60
      $region59: #{cross_multi_headed_attention.1} parent=55 // pred_region
        %s1205 = smul.u32 2, %s25
        %p1206 = scmp.lt.s32.totalorder %s24, 1
        %s1207 = scalar_select %p1206, %s24, 1
        %p1208 = scmp.lt.s32.totalorder %s1205, 1
        %s1209 = scalar_select %p1208, %s1205, 1
        %s1210 = smul.addr %s1207, 2
        %s1211 = sadd.s32 %s1209, %s1210
        %s1212 = smul.addr %s1211, 8
        %s1213 = scalar_lea.vmem %s5, %s1212
      $region60: #{cross_multi_headed_attention.1} parent=55 // pred_fallthru
        _
    $region56: #{cross_multi_headed_attention.1} parent=5 // pred_fallthru
      _
  $region6: #{cross_multi_headed_attention.1} parent=0 // loop_footer
    %s15 = sadd.s32 1, %s11
  $region7: #{cross_multi_headed_attention.1} parent=0 // loop_footer_branch
    %10 = sbr.rel target = $region3
  $region8: #{cross_multi_headed_attention.1} parent=0 // loop_exit
    _

</llo_original>
